<compile_context>
chip_gen: v7x
topology: tpu7x:2x2x1
jax: 0.10.0
libtpu: 0.0.40
codegen_flags: <defaults>
</compile_context>

<pallas_src>
import math
import functools

import jax
import jax.numpy as jnp
from jax import lax
from jax.experimental import pallas as pl
from jax.experimental.pallas import tpu as pltpu


# -----------------------------------------------------------------------------
# Kernel: one grid step == `block_b` batch rows, flattened to (block_b*S, D).
# -----------------------------------------------------------------------------
def attention_kernel(x_ref, wq_ref, bq_ref, wk_ref, bk_ref, wv_ref, bv_ref,
                     cos_ref, sina_ref, sinb_ref, o_ref, acc_ref,
                     *, n_heads, head_dim, block_b, seq_len, approx_recip):
    f32 = jnp.float32
    x = x_ref[...]                              # (block_b*S, D), MXU operand dtype
    op_dtype = x.dtype
    D = n_heads * head_dim

    # ---- QKV projections: tall full-width matmuls, f32 accumulation -------
    xq = jnp.dot(x, wq_ref[...], preferred_element_type=f32) + bq_ref[...]
    xk = jnp.dot(x, wk_ref[...], preferred_element_type=f32) + bk_ref[...]
    xv = jnp.dot(x, wv_ref[...], preferred_element_type=f32) + bv_ref[...]

    # ---- RoPE: pair-swap via lane rolls + sign-folded sin tables ----------
    #   out[2j]   = x[2j]  * cos_j - x[2j+1] * sin_j
    #   out[2j+1] = x[2j+1]* cos_j + x[2j]   * sin_j
    # Tables arrive per-head width (S, head_dim); broadcast across heads
    # (lane concat) and across block_b batch rows (sublane concat) once.
    def tile_tables(t):
        if n_heads > 1:
            t = jnp.concatenate([t] * n_heads, axis=-1)
        if block_b > 1:
            t = jnp.concatenate([t] * block_b, axis=0)
        return t

    cos = tile_tables(cos_ref[...])
    sin_a = tile_tables(sina_ref[...])
    sin_b = tile_tables(sinb_ref[...])

    def lane_roll(t, shift):
        # pltpu.roll is a single XLU vrot, but only use it when the lane dim
        # is a native multiple of 128; for small D fall back to the
        # slice+concat lowering of jnp.roll (known-good at D < 128).
        if D % 128 == 0:
            return pltpu.roll(t, shift % D, axis=-1)
        return jnp.roll(t, shift, axis=-1)

    def rope(t):
        nxt = lane_roll(t, -1)   # nxt[i] = t[i+1]; pairs never straddle heads
        prv = lane_roll(t, 1)    # prv[i] = t[i-1]
        # sin_a carries (-sin) on even lanes / 0 on odd; sin_b carries (+sin)
        # on odd lanes / 0 on even, so the wrap-around lanes never contribute.
        return t * cos + nxt * sin_a + prv * sin_b

    xq = rope(xq)
    xk = rope(xk)

    # ---- per-(batch-row, head) scaled dot-product attention ---------------
    # 1/sqrt(head_dim) is already folded into Wq/bq host-side.  Softmax math
    # stays f32 (v5e has no bf16 VPU/EUP); only MXU operands use op_dtype.
    # Each head result is written into the f32 VMEM scratch as it finishes
    # (bounded live ranges), then one lane-dense (M, D) store at the end.
    # TODO(synk): for long S, replace the dense (S,S) softmax with a KV-tiled
    # flash-style online softmax (second 'arbitrary' grid axis + m/l/acc
    # scratch) — required for v7x's 64 MiB VMEM at S >~ 1k.
    for b in range(block_b):
        r0 = b * seq_len
        for h in range(n_heads):
            c0 = h * head_dim
            qh = xq[r0:r0 + seq_len, c0:c0 + head_dim].astype(op_dtype)
            kh = xk[r0:r0 + seq_len, c0:c0 + head_dim].astype(op_dtype)
            vh = xv[r0:r0 + seq_len, c0:c0 + head_dim].astype(op_dtype)

            # Contract K on its last dim directly (no materialized K^T).
            s = lax.dot_general(qh, kh, (((1,), (1,)), ((), ())),
                                preferred_element_type=f32)          # (S, S)
            m = jnp.max(s, axis=-1, keepdims=True)
            p = jnp.exp(s - m)                                       # f32
            l = jnp.sum(p, axis=-1, keepdims=True)
            oh = jnp.dot(p.astype(op_dtype), vh, preferred_element_type=f32)
            oh = oh * pl.reciprocal(l, approx=approx_recip)
            acc_ref[r0:r0 + seq_len, c0:c0 + head_dim] = oh

    o_ref[...] = acc_ref[...].astype(o_ref.dtype)


# -----------------------------------------------------------------------------
# Host-side preparation (hoisted out of the per-call path).
# -----------------------------------------------------------------------------
def _rope_tables(head_dim, total_len, seq_len, start_pos, base=10000.0):
    i = jnp.arange(1, head_dim // 2 + 1, dtype=jnp.float32)
    theta = base ** (-2.0 * (i - 1.0) / head_dim)                # (hd/2,)
    m = jnp.arange(total_len, dtype=jnp.float32)
    ang = jnp.outer(m, theta)[start_pos:start_pos + seq_len]     # (S, hd/2)
    cos = jnp.repeat(jnp.cos(ang), 2, axis=-1)                   # c0,c0,c1,c1,...
    sin = jnp.sin(ang)
    z = jnp.zeros_like(sin)
    sin_a = jnp.stack([-sin, z], axis=-1).reshape(seq_len, head_dim)  # -sin on even
    sin_b = jnp.stack([z, sin], axis=-1).reshape(seq_len, head_dim)   # +sin on odd
    return cos, sin_a, sin_b


def prepare_attention(params, *, n_heads, max_seq_len, seq_len, start_pos=0,
                      operand_dtype=jnp.bfloat16):
    """Precompute transposed/cast weights, scaled Q projection and RoPE tables."""
    wq, bq, wk, bk, wv, bv = params
    dim = wq.shape[0]
    assert dim % n_heads == 0, "dim must be divisible by n_heads"
    head_dim = dim // n_heads
    assert head_dim % 2 == 0, "RoPE pair-swap requires an even head_dim"

    f32 = jnp.float32
    scale = 1.0 / math.sqrt(head_dim)
    # Fold 1/sqrt(head_dim) into the Q projection in f32 (before any bf16
    # cast): scaling commutes with the RoPE rotation, so this is exact math.
    wqT = (wq.astype(f32).T * scale).astype(operand_dtype)
    wkT = wk.astype(f32).T.astype(operand_dtype)
    wvT = wv.astype(f32).T.astype(operand_dtype)
    bq2 = (bq.astype(f32) * scale)[None, :]
    bk2 = bk.astype(f32)[None, :]
    bv2 = bv.astype(f32)[None, :]

    cos, sin_a, sin_b = _rope_tables(head_dim, max_seq_len * 2, seq_len, start_pos)
    return dict(wqT=wqT, bq=bq2, wkT=wkT, bk=bk2, wvT=wvT, bv=bv2,
                cos=cos, sin_a=sin_a, sin_b=sin_b,
                n_heads=n_heads, head_dim=head_dim, seq_len=seq_len)


def _pick_block_b(bs, seq_len, target_rows=512):
    """Largest divisor of bs with block_b*seq_len <= target_rows, while
    keeping >= 2 grid steps when bs >= 2 (so both v7x TensorCores get work)."""
    best = 1
    for cand in range(1, bs + 1):
        if bs % cand == 0 and cand * seq_len <= target_rows:
            best = cand
    while best > 1 and bs // best < 2:
        best -= 1
        while bs % best != 0:
            best -= 1
    return best


# -----------------------------------------------------------------------------
# pallas_call wrapper.
# -----------------------------------------------------------------------------
def attention_forward(x, prepared, *, block_b=None):
    # TODO(synk): the optional attention `mask` argument of the reference
    # forward is not implemented (the module's default path uses mask=None).
    bs, S, D = x.shape
    n_heads = prepared["n_heads"]
    head_dim = prepared["head_dim"]
    assert S == prepared["seq_len"], "prepared RoPE tables built for a different seq_len"
    assert D == n_heads * head_dim

    if block_b is None:
        block_b = _pick_block_b(bs, S)
    assert bs % block_b == 0
    grid = (bs // block_b,)
    m = block_b * S

    op_dtype = prepared["wqT"].dtype
    op_bytes = jnp.dtype(op_dtype).itemsize
    out_bytes = jnp.dtype(x.dtype).itemsize
    approx_recip = bool(op_dtype == jnp.bfloat16)

    # Flatten batch into the M dimension so each grid step runs tall,
    # lane-dense (m, D) matmuls and a single full-width output store.
    x2 = x.reshape(bs * S, D).astype(op_dtype)

    kernel = functools.partial(attention_kernel, n_heads=n_heads,
                               head_dim=head_dim, block_b=block_b,
                               seq_len=S, approx_recip=approx_recip)

    # Whole-array, single-buffered VMEM residency for grid-constant operands.
    const_spec = pl.BlockSpec(memory_space=pltpu.MemorySpace.VMEM)
    row_spec = pl.BlockSpec((m, D), lambda b: (b, 0))

    # Explicit scoped-VMEM budget (don't rely on the 16/32 MiB defaults;
    # matters for large D / v7x's 64 MiB physical VMEM).
    est = (3 * D * D * op_bytes                  # resident Wq^T/Wk^T/Wv^T
           + 3 * D * 4                           # biases
           + 3 * S * head_dim * 4                # RoPE tables
           + 2 * 2 * m * D * op_bytes            # double-buffered x blocks
           + 2 * m * D * out_bytes               # double-buffered out blocks
           + m * D * 4                           # f32 scratch accumulator
           + 12 * m * D * 4 + 2 * S * S * 4)     # working-set headroom
    vmem_limit = int(min(max(2 * est, 32 << 20), 64 << 20))

    out2 = pl.pallas_call(
        kernel,
        out_shape=jax.ShapeDtypeStruct((bs * S, D), x.dtype),
        grid=grid,
        in_specs=[
            row_spec,                             # x rows for this step
            const_spec, const_spec,               # Wq^T (scaled), bq (scaled)
            const_spec, const_spec,               # Wk^T, bk
            const_spec, const_spec,               # Wv^T, bv
            const_spec, const_spec, const_spec,   # cos, sin_a, sin_b
        ],
        out_specs=row_spec,
        scratch_shapes=[pltpu.VMEM((m, D), jnp.float32)],
        compiler_params=pltpu.CompilerParams(
            dimension_semantics=("parallel",),
            vmem_limit_bytes=vmem_limit),
    )(x2, prepared["wqT"], prepared["bq"], prepared["wkT"], prepared["bk"],
      prepared["wvT"], prepared["bv"], prepared["cos"], prepared["sin_a"],
      prepared["sin_b"])
    return out2.reshape(bs, S, D)


# -----------------------------------------------------------------------------
# Pure-JAX reference (mirrors the PyTorch forward exactly) for validation.
# -----------------------------------------------------------------------------
def attention_reference(x, params, *, n_heads, max_seq_len, start_pos=0):
    bs, S, D = x.shape
    hd = D // n_heads
    wq, bq, wk, bk, wv, bv = params
    xq = (x @ wq.T + bq).reshape(bs, S, n_heads, hd)
    xk = (x @ wk.T + bk).reshape(bs, S, n_heads, hd)
    xv = (x @ wv.T + bv).reshape(bs, S, n_heads, hd)

    i = jnp.arange(1, hd // 2 + 1, dtype=jnp.float32)
    theta = 10000.0 ** (-2.0 * (i - 1.0) / hd)
    m = jnp.arange(max_seq_len * 2, dtype=jnp.float32)
    freqs = jnp.exp(1j * jnp.outer(m, theta).astype(jnp.complex64))
    freqs = freqs[start_pos:start_pos + S]                       # (S, hd/2)

    def rope(t):
        tc = t.reshape(bs, S, n_heads, hd // 2, 2)
        tc = (tc[..., 0] + 1j * tc[..., 1]) * freqs[None, :, None, :]
        return jnp.stack([jnp.real(tc), jnp.imag(tc)], axis=-1).reshape(bs, S, n_heads, hd)

    q = rope(xq).transpose(0, 2, 1, 3)
    k = rope(xk).transpose(0, 2, 1, 3)
    v = xv.transpose(0, 2, 1, 3)
    scores = (q @ k.transpose(0, 1, 3, 2)) / math.sqrt(hd)
    w = jax.nn.softmax(scores.astype(jnp.float32), axis=-1)
    o = w @ v
    return o.transpose(0, 2, 1, 3).reshape(bs, S, D)


if __name__ == "__main__":
    bs, seq_len, dim, n_heads, max_seq_len = 2, 8, 32, 4, 16

    key = jax.random.PRNGKey(0)
    kx, kq, kbq, kk, kbk, kv, kbv = jax.random.split(key, 7)
    x = jax.random.normal(kx, (bs, seq_len, dim), dtype=jnp.float32)
    s = 1.0 / math.sqrt(dim)
    params = (
        jax.random.uniform(kq, (dim, dim), jnp.float32, -s, s),   # Wq [out,in]
        jax.random.uniform(kbq, (dim,), jnp.float32, -s, s),      # bq
        jax.random.uniform(kk, (dim, dim), jnp.float32, -s, s),   # Wk
        jax.random.uniform(kbk, (dim,), jnp.float32, -s, s),      # bk
        jax.random.uniform(kv, (dim, dim), jnp.float32, -s, s),   # Wv
        jax.random.uniform(kbv, (dim,), jnp.float32, -s, s),      # bv
    )

    ref = attention_reference(x, params, n_heads=n_heads, max_seq_len=max_seq_len)

    # 1) exact-path validation: f32 MXU operands, exact reciprocal.
    prep_f32 = prepare_attention(params, n_heads=n_heads, max_seq_len=max_seq_len,
                                 seq_len=seq_len, operand_dtype=jnp.float32)
    out_f32 = jax.block_until_ready(attention_forward(x, prep_f32))
    assert out_f32.shape == (bs, seq_len, dim)
    err32 = jnp.max(jnp.abs(out_f32 - ref))
    assert jnp.allclose(out_f32, ref, atol=1e-4, rtol=1e-4), \
        f"f32 path max abs err = {err32}"

    # 2) perf-default path: bf16 MXU operands (native MXU dtype), f32
    #    accumulation + f32 softmax, approx reciprocal.  Looser tolerance.
    prep_bf16 = prepare_attention(params, n_heads=n_heads, max_seq_len=max_seq_len,
                                  seq_len=seq_len, operand_dtype=jnp.bfloat16)
    out_bf16 = jax.block_until_ready(attention_forward(x, prep_bf16))
    assert out_bf16.shape == (bs, seq_len, dim)
    err16 = jnp.max(jnp.abs(out_bf16 - ref))
    assert jnp.allclose(out_bf16, ref, atol=5e-2, rtol=5e-2), \
        f"bf16 path max abs err = {err16}"

    print("KERNEL_OK")
</pallas_src>

<mosaic_0001>
module attributes {stable_mosaic.version = 11 : i64} {
  func.func @attention_kernel(%arg0: i32, %arg1: memref<8x32xf32, #tpu.memory_space<vmem>>, %arg2: memref<32x32xf32, #tpu.memory_space<vmem>>, %arg3: memref<1x32xf32, #tpu.memory_space<vmem>>, %arg4: memref<32x32xf32, #tpu.memory_space<vmem>>, %arg5: memref<1x32xf32, #tpu.memory_space<vmem>>, %arg6: memref<32x32xf32, #tpu.memory_space<vmem>>, %arg7: memref<1x32xf32, #tpu.memory_space<vmem>>, %arg8: memref<8x8xf32, #tpu.memory_space<vmem>>, %arg9: memref<8x8xf32, #tpu.memory_space<vmem>>, %arg10: memref<8x8xf32, #tpu.memory_space<vmem>>, %arg11: memref<8x32xf32, #tpu.memory_space<vmem>>, %arg12: memref<8x32xf32, #tpu.memory_space<vmem>>) attributes {dimension_semantics = [#tpu.dimension_semantics<parallel>], iteration_bounds = array<i64: 2>, scalar_prefetch = 0 : i64, scratch_operands = 1 : i64, tpu.core_type = #tpu.core_type<tc>, window_params = [{transform_indices = @transform_0, window_bounds = array<i64: 8, 32>}, {pipeline_mode = #tpu.pipeline_mode<synchronous>, transform_indices = @transform_1, window_bounds = array<i64: 32, 32>}, {pipeline_mode = #tpu.pipeline_mode<synchronous>, transform_indices = @transform_2, window_bounds = array<i64: 1, 32>}, {pipeline_mode = #tpu.pipeline_mode<synchronous>, transform_indices = @transform_3, window_bounds = array<i64: 32, 32>}, {pipeline_mode = #tpu.pipeline_mode<synchronous>, transform_indices = @transform_4, window_bounds = array<i64: 1, 32>}, {pipeline_mode = #tpu.pipeline_mode<synchronous>, transform_indices = @transform_5, window_bounds = array<i64: 32, 32>}, {pipeline_mode = #tpu.pipeline_mode<synchronous>, transform_indices = @transform_6, window_bounds = array<i64: 1, 32>}, {pipeline_mode = #tpu.pipeline_mode<synchronous>, transform_indices = @transform_7, window_bounds = array<i64: 8, 8>}, {pipeline_mode = #tpu.pipeline_mode<synchronous>, transform_indices = @transform_8, window_bounds = array<i64: 8, 8>}, {pipeline_mode = #tpu.pipeline_mode<synchronous>, transform_indices = @transform_9, window_bounds = array<i64: 8, 8>}, {transform_indices = @transform_10, window_bounds = array<i64: 8, 32>}]} {
    %c0 = arith.constant 0 : index
    %c0_0 = arith.constant 0 : index
    %0 = vector.load %arg1[%c0, %c0_0] : memref<8x32xf32, #tpu.memory_space<vmem>>, vector<8x32xf32>
    %c0_1 = arith.constant 0 : index
    %c0_2 = arith.constant 0 : index
    %1 = vector.load %arg2[%c0_1, %c0_2] : memref<32x32xf32, #tpu.memory_space<vmem>>, vector<32x32xf32>
    %cst = arith.constant dense<0.000000e+00> : vector<8x32xf32>
    %2 = tpu.matmul %0, %1, %cst {dimension_numbers = #tpu.dot_dimension_numbers<[1], [0], [0], [1], [0, 0, 1, 1], [], []>} : vector<8x32xf32>, vector<32x32xf32>, vector<8x32xf32> -> vector<8x32xf32>
    %c0_3 = arith.constant 0 : index
    %c0_4 = arith.constant 0 : index
    %3 = vector.load %arg3[%c0_3, %c0_4] : memref<1x32xf32, #tpu.memory_space<vmem>>, vector<1x32xf32>
    %4 = vector.broadcast %3 : vector<1x32xf32> to vector<8x32xf32>
    %5 = arith.addf %2, %4 : vector<8x32xf32>
    %c0_5 = arith.constant 0 : index
    %c0_6 = arith.constant 0 : index
    %6 = vector.load %arg4[%c0_5, %c0_6] : memref<32x32xf32, #tpu.memory_space<vmem>>, vector<32x32xf32>
    %cst_7 = arith.constant dense<0.000000e+00> : vector<8x32xf32>
    %7 = tpu.matmul %0, %6, %cst_7 {dimension_numbers = #tpu.dot_dimension_numbers<[1], [0], [0], [1], [0, 0, 1, 1], [], []>} : vector<8x32xf32>, vector<32x32xf32>, vector<8x32xf32> -> vector<8x32xf32>
    %c0_8 = arith.constant 0 : index
    %c0_9 = arith.constant 0 : index
    %8 = vector.load %arg5[%c0_8, %c0_9] : memref<1x32xf32, #tpu.memory_space<vmem>>, vector<1x32xf32>
    %9 = vector.broadcast %8 : vector<1x32xf32> to vector<8x32xf32>
    %10 = arith.addf %7, %9 : vector<8x32xf32>
    %c0_10 = arith.constant 0 : index
    %c0_11 = arith.constant 0 : index
    %11 = vector.load %arg6[%c0_10, %c0_11] : memref<32x32xf32, #tpu.memory_space<vmem>>, vector<32x32xf32>
    %cst_12 = arith.constant dense<0.000000e+00> : vector<8x32xf32>
    %12 = tpu.matmul %0, %11, %cst_12 {dimension_numbers = #tpu.dot_dimension_numbers<[1], [0], [0], [1], [0, 0, 1, 1], [], []>} : vector<8x32xf32>, vector<32x32xf32>, vector<8x32xf32> -> vector<8x32xf32>
    %c0_13 = arith.constant 0 : index
    %c0_14 = arith.constant 0 : index
    %13 = vector.load %arg7[%c0_13, %c0_14] : memref<1x32xf32, #tpu.memory_space<vmem>>, vector<1x32xf32>
    %14 = vector.broadcast %13 : vector<1x32xf32> to vector<8x32xf32>
    %15 = arith.addf %12, %14 : vector<8x32xf32>
    %c0_15 = arith.constant 0 : index
    %c0_16 = arith.constant 0 : index
    %16 = vector.load %arg8[%c0_15, %c0_16] : memref<8x8xf32, #tpu.memory_space<vmem>>, vector<8x8xf32>
    %17 = tpu.concatenate %16, %16, %16, %16 in 1 : vector<8x8xf32>, vector<8x8xf32>, vector<8x8xf32>, vector<8x8xf32> -> vector<8x32xf32>
    %c0_17 = arith.constant 0 : index
    %c0_18 = arith.constant 0 : index
    %18 = vector.load %arg9[%c0_17, %c0_18] : memref<8x8xf32, #tpu.memory_space<vmem>>, vector<8x8xf32>
    %19 = tpu.concatenate %18, %18, %18, %18 in 1 : vector<8x8xf32>, vector<8x8xf32>, vector<8x8xf32>, vector<8x8xf32> -> vector<8x32xf32>
    %c0_19 = arith.constant 0 : index
    %c0_20 = arith.constant 0 : index
    %20 = vector.load %arg10[%c0_19, %c0_20] : memref<8x8xf32, #tpu.memory_space<vmem>>, vector<8x8xf32>
    %21 = tpu.concatenate %20, %20, %20, %20 in 1 : vector<8x8xf32>, vector<8x8xf32>, vector<8x8xf32>, vector<8x8xf32> -> vector<8x32xf32>
    %22 = vector.extract_strided_slice %5 {offsets = [0, 1], sizes = [8, 31], strides = [1, 1]} : vector<8x32xf32> to vector<8x31xf32>
    %23 = vector.extract_strided_slice %5 {offsets = [0, 0], sizes = [8, 1], strides = [1, 1]} : vector<8x32xf32> to vector<8x1xf32>
    %24 = tpu.concatenate %22, %23 in 1 : vector<8x31xf32>, vector<8x1xf32> -> vector<8x32xf32>
    %25 = vector.extract_strided_slice %5 {offsets = [0, 31], sizes = [8, 1], strides = [1, 1]} : vector<8x32xf32> to vector<8x1xf32>
    %26 = vector.extract_strided_slice %5 {offsets = [0, 0], sizes = [8, 31], strides = [1, 1]} : vector<8x32xf32> to vector<8x31xf32>
    %27 = tpu.concatenate %25, %26 in 1 : vector<8x1xf32>, vector<8x31xf32> -> vector<8x32xf32>
    %28 = arith.mulf %5, %17 : vector<8x32xf32>
    %29 = arith.mulf %24, %19 : vector<8x32xf32>
    %30 = arith.addf %28, %29 : vector<8x32xf32>
    %31 = arith.mulf %27, %21 : vector<8x32xf32>
    %32 = arith.addf %30, %31 : vector<8x32xf32>
    %33 = vector.extract_strided_slice %10 {offsets = [0, 1], sizes = [8, 31], strides = [1, 1]} : vector<8x32xf32> to vector<8x31xf32>
    %34 = vector.extract_strided_slice %10 {offsets = [0, 0], sizes = [8, 1], strides = [1, 1]} : vector<8x32xf32> to vector<8x1xf32>
    %35 = tpu.concatenate %33, %34 in 1 : vector<8x31xf32>, vector<8x1xf32> -> vector<8x32xf32>
    %36 = vector.extract_strided_slice %10 {offsets = [0, 31], sizes = [8, 1], strides = [1, 1]} : vector<8x32xf32> to vector<8x1xf32>
    %37 = vector.extract_strided_slice %10 {offsets = [0, 0], sizes = [8, 31], strides = [1, 1]} : vector<8x32xf32> to vector<8x31xf32>
    %38 = tpu.concatenate %36, %37 in 1 : vector<8x1xf32>, vector<8x31xf32> -> vector<8x32xf32>
    %39 = arith.mulf %10, %17 : vector<8x32xf32>
    %40 = arith.mulf %35, %19 : vector<8x32xf32>
    %41 = arith.addf %39, %40 : vector<8x32xf32>
    %42 = arith.mulf %38, %21 : vector<8x32xf32>
    %43 = arith.addf %41, %42 : vector<8x32xf32>
    %44 = vector.extract_strided_slice %32 {offsets = [0, 0], sizes = [8, 8], strides = [1, 1]} : vector<8x32xf32> to vector<8x8xf32>
    %45 = vector.extract_strided_slice %43 {offsets = [0, 0], sizes = [8, 8], strides = [1, 1]} : vector<8x32xf32> to vector<8x8xf32>
    %46 = vector.extract_strided_slice %15 {offsets = [0, 0], sizes = [8, 8], strides = [1, 1]} : vector<8x32xf32> to vector<8x8xf32>
    %cst_21 = arith.constant dense<0.000000e+00> : vector<8x8xf32>
    %47 = tpu.matmul %44, %45, %cst_21 {dimension_numbers = #tpu.dot_dimension_numbers<[1], [1], [0], [0], [0, 0, 1, 0], [], []>} : vector<8x8xf32>, vector<8x8xf32>, vector<8x8xf32> -> vector<8x8xf32>
    %cst_22 = arith.constant dense<0xFF800000> : vector<8xf32>
    %48 = vector.multi_reduction <maximumf>, %47, %cst_22 [1] : vector<8x8xf32> to vector<8xf32>
    %49 = vector.shape_cast %48 : vector<8xf32> to vector<8x1xf32>
    %50 = vector.broadcast %49 : vector<8x1xf32> to vector<8x8xf32>
    %51 = arith.subf %47, %50 : vector<8x8xf32>
    %52 = math.exp %51 : vector<8x8xf32>
    %cst_23 = arith.constant dense<0.000000e+00> : vector<8xf32>
    %53 = vector.multi_reduction <add>, %52, %cst_23 [1] : vector<8x8xf32> to vector<8xf32>
    %54 = vector.shape_cast %53 : vector<8xf32> to vector<8x1xf32>
    %cst_24 = arith.constant dense<0.000000e+00> : vector<8x8xf32>
    %55 = tpu.matmul %52, %46, %cst_24 {dimension_numbers = #tpu.dot_dimension_numbers<[1], [0], [0], [1], [0, 0, 1, 1], [], []>} : vector<8x8xf32>, vector<8x8xf32>, vector<8x8xf32> -> vector<8x8xf32>
    %56 = tpu.reciprocal %54 : vector<8x1xf32> -> vector<8x1xf32>
    %57 = vector.broadcast %56 : vector<8x1xf32> to vector<8x8xf32>
    %58 = arith.mulf %55, %57 : vector<8x8xf32>
    %c0_25 = arith.constant 0 : index
    %c0_26 = arith.constant 0 : index
    %59 = vector.load %arg12[%c0_25, %c0_26] : memref<8x32xf32, #tpu.memory_space<vmem>>, vector<8x8xf32>
    tpu.vector_store %arg12[%c0_25, %c0_26], %58 {strides = array<i32>} : memref<8x32xf32, #tpu.memory_space<vmem>>, vector<8x8xf32>,
    %60 = vector.extract_strided_slice %32 {offsets = [0, 8], sizes = [8, 8], strides = [1, 1]} : vector<8x32xf32> to vector<8x8xf32>
    %61 = vector.extract_strided_slice %43 {offsets = [0, 8], sizes = [8, 8], strides = [1, 1]} : vector<8x32xf32> to vector<8x8xf32>
    %62 = vector.extract_strided_slice %15 {offsets = [0, 8], sizes = [8, 8], strides = [1, 1]} : vector<8x32xf32> to vector<8x8xf32>
    %cst_27 = arith.constant dense<0.000000e+00> : vector<8x8xf32>
    %63 = tpu.matmul %60, %61, %cst_27 {dimension_numbers = #tpu.dot_dimension_numbers<[1], [1], [0], [0], [0, 0, 1, 0], [], []>} : vector<8x8xf32>, vector<8x8xf32>, vector<8x8xf32> -> vector<8x8xf32>
    %cst_28 = arith.constant dense<0xFF800000> : vector<8xf32>
    %64 = vector.multi_reduction <maximumf>, %63, %cst_28 [1] : vector<8x8xf32> to vector<8xf32>
    %65 = vector.shape_cast %64 : vector<8xf32> to vector<8x1xf32>
    %66 = vector.broadcast %65 : vector<8x1xf32> to vector<8x8xf32>
    %67 = arith.subf %63, %66 : vector<8x8xf32>
    %68 = math.exp %67 : vector<8x8xf32>
    %cst_29 = arith.constant dense<0.000000e+00> : vector<8xf32>
    %69 = vector.multi_reduction <add>, %68, %cst_29 [1] : vector<8x8xf32> to vector<8xf32>
    %70 = vector.shape_cast %69 : vector<8xf32> to vector<8x1xf32>
    %cst_30 = arith.constant dense<0.000000e+00> : vector<8x8xf32>
    %71 = tpu.matmul %68, %62, %cst_30 {dimension_numbers = #tpu.dot_dimension_numbers<[1], [0], [0], [1], [0, 0, 1, 1], [], []>} : vector<8x8xf32>, vector<8x8xf32>, vector<8x8xf32> -> vector<8x8xf32>
    %72 = tpu.reciprocal %70 : vector<8x1xf32> -> vector<8x1xf32>
    %73 = vector.broadcast %72 : vector<8x1xf32> to vector<8x8xf32>
    %74 = arith.mulf %71, %73 : vector<8x8xf32>
    %c0_31 = arith.constant 0 : index
    %c8 = arith.constant 8 : index
    %75 = vector.load %arg12[%c0_31, %c8] : memref<8x32xf32, #tpu.memory_space<vmem>>, vector<8x8xf32>
    tpu.vector_store %arg12[%c0_31, %c8], %74 {strides = array<i32>} : memref<8x32xf32, #tpu.memory_space<vmem>>, vector<8x8xf32>,
    %76 = vector.extract_strided_slice %32 {offsets = [0, 16], sizes = [8, 8], strides = [1, 1]} : vector<8x32xf32> to vector<8x8xf32>
    %77 = vector.extract_strided_slice %43 {offsets = [0, 16], sizes = [8, 8], strides = [1, 1]} : vector<8x32xf32> to vector<8x8xf32>
    %78 = vector.extract_strided_slice %15 {offsets = [0, 16], sizes = [8, 8], strides = [1, 1]} : vector<8x32xf32> to vector<8x8xf32>
    %cst_32 = arith.constant dense<0.000000e+00> : vector<8x8xf32>
    %79 = tpu.matmul %76, %77, %cst_32 {dimension_numbers = #tpu.dot_dimension_numbers<[1], [1], [0], [0], [0, 0, 1, 0], [], []>} : vector<8x8xf32>, vector<8x8xf32>, vector<8x8xf32> -> vector<8x8xf32>
    %cst_33 = arith.constant dense<0xFF800000> : vector<8xf32>
    %80 = vector.multi_reduction <maximumf>, %79, %cst_33 [1] : vector<8x8xf32> to vector<8xf32>
    %81 = vector.shape_cast %80 : vector<8xf32> to vector<8x1xf32>
    %82 = vector.broadcast %81 : vector<8x1xf32> to vector<8x8xf32>
    %83 = arith.subf %79, %82 : vector<8x8xf32>
    %84 = math.exp %83 : vector<8x8xf32>
    %cst_34 = arith.constant dense<0.000000e+00> : vector<8xf32>
    %85 = vector.multi_reduction <add>, %84, %cst_34 [1] : vector<8x8xf32> to vector<8xf32>
    %86 = vector.shape_cast %85 : vector<8xf32> to vector<8x1xf32>
    %cst_35 = arith.constant dense<0.000000e+00> : vector<8x8xf32>
    %87 = tpu.matmul %84, %78, %cst_35 {dimension_numbers = #tpu.dot_dimension_numbers<[1], [0], [0], [1], [0, 0, 1, 1], [], []>} : vector<8x8xf32>, vector<8x8xf32>, vector<8x8xf32> -> vector<8x8xf32>
    %88 = tpu.reciprocal %86 : vector<8x1xf32> -> vector<8x1xf32>
    %89 = vector.broadcast %88 : vector<8x1xf32> to vector<8x8xf32>
    %90 = arith.mulf %87, %89 : vector<8x8xf32>
    %c0_36 = arith.constant 0 : index
    %c16 = arith.constant 16 : index
    %91 = vector.load %arg12[%c0_36, %c16] : memref<8x32xf32, #tpu.memory_space<vmem>>, vector<8x8xf32>
    tpu.vector_store %arg12[%c0_36, %c16], %90 {strides = array<i32>} : memref<8x32xf32, #tpu.memory_space<vmem>>, vector<8x8xf32>,
    %92 = vector.extract_strided_slice %32 {offsets = [0, 24], sizes = [8, 8], strides = [1, 1]} : vector<8x32xf32> to vector<8x8xf32>
    %93 = vector.extract_strided_slice %43 {offsets = [0, 24], sizes = [8, 8], strides = [1, 1]} : vector<8x32xf32> to vector<8x8xf32>
    %94 = vector.extract_strided_slice %15 {offsets = [0, 24], sizes = [8, 8], strides = [1, 1]} : vector<8x32xf32> to vector<8x8xf32>
    %cst_37 = arith.constant dense<0.000000e+00> : vector<8x8xf32>
    %95 = tpu.matmul %92, %93, %cst_37 {dimension_numbers = #tpu.dot_dimension_numbers<[1], [1], [0], [0], [0, 0, 1, 0], [], []>} : vector<8x8xf32>, vector<8x8xf32>, vector<8x8xf32> -> vector<8x8xf32>
    %cst_38 = arith.constant dense<0xFF800000> : vector<8xf32>
    %96 = vector.multi_reduction <maximumf>, %95, %cst_38 [1] : vector<8x8xf32> to vector<8xf32>
    %97 = vector.shape_cast %96 : vector<8xf32> to vector<8x1xf32>
    %98 = vector.broadcast %97 : vector<8x1xf32> to vector<8x8xf32>
    %99 = arith.subf %95, %98 : vector<8x8xf32>
    %100 = math.exp %99 : vector<8x8xf32>
    %cst_39 = arith.constant dense<0.000000e+00> : vector<8xf32>
    %101 = vector.multi_reduction <add>, %100, %cst_39 [1] : vector<8x8xf32> to vector<8xf32>
    %102 = vector.shape_cast %101 : vector<8xf32> to vector<8x1xf32>
    %cst_40 = arith.constant dense<0.000000e+00> : vector<8x8xf32>
    %103 = tpu.matmul %100, %94, %cst_40 {dimension_numbers = #tpu.dot_dimension_numbers<[1], [0], [0], [1], [0, 0, 1, 1], [], []>} : vector<8x8xf32>, vector<8x8xf32>, vector<8x8xf32> -> vector<8x8xf32>
    %104 = tpu.reciprocal %102 : vector<8x1xf32> -> vector<8x1xf32>
    %105 = vector.broadcast %104 : vector<8x1xf32> to vector<8x8xf32>
    %106 = arith.mulf %103, %105 : vector<8x8xf32>
    %c0_41 = arith.constant 0 : index
    %c24 = arith.constant 24 : index
    %107 = vector.load %arg12[%c0_41, %c24] : memref<8x32xf32, #tpu.memory_space<vmem>>, vector<8x8xf32>
    tpu.vector_store %arg12[%c0_41, %c24], %106 {strides = array<i32>} : memref<8x32xf32, #tpu.memory_space<vmem>>, vector<8x8xf32>,
    %c0_42 = arith.constant 0 : index
    %c0_43 = arith.constant 0 : index
    %108 = vector.load %arg12[%c0_42, %c0_43] : memref<8x32xf32, #tpu.memory_space<vmem>>, vector<8x32xf32>
    %c0_44 = arith.constant 0 : index
    %c0_45 = arith.constant 0 : index
    %109 = vector.load %arg11[%c0_44, %c0_45] : memref<8x32xf32, #tpu.memory_space<vmem>>, vector<8x32xf32>
    tpu.vector_store %arg11[%c0_44, %c0_45], %108 {strides = array<i32>} : memref<8x32xf32, #tpu.memory_space<vmem>>, vector<8x32xf32>,
    return
  }
  func.func @transform_0(%arg0: i32) -> (i32, i32) {
    %c0_i32 = arith.constant 0 : i32
    %c0_i32_0 = arith.constant 0 : i32
    return %arg0, %c0_i32 : i32, i32
  }
  func.func @transform_1(%arg0: i32) -> (i32, i32) {
    %c0_i32 = arith.constant 0 : i32
    %c0_i32_0 = arith.constant 0 : i32
    %c0_i32_1 = arith.constant 0 : i32
    return %c0_i32, %c0_i32_0 : i32, i32
  }
  func.func @transform_2(%arg0: i32) -> (i32, i32) {
    %c0_i32 = arith.constant 0 : i32
    %c0_i32_0 = arith.constant 0 : i32
    %c0_i32_1 = arith.constant 0 : i32
    return %c0_i32, %c0_i32_0 : i32, i32
  }
  func.func @transform_3(%arg0: i32) -> (i32, i32) {
    %c0_i32 = arith.constant 0 : i32
    %c0_i32_0 = arith.constant 0 : i32
    %c0_i32_1 = arith.constant 0 : i32
    return %c0_i32, %c0_i32_0 : i32, i32
  }
  func.func @transform_4(%arg0: i32) -> (i32, i32) {
    %c0_i32 = arith.constant 0 : i32
    %c0_i32_0 = arith.constant 0 : i32
    %c0_i32_1 = arith.constant 0 : i32
    return %c0_i32, %c0_i32_0 : i32, i32
  }
  func.func @transform_5(%arg0: i32) -> (i32, i32) {
    %c0_i32 = arith.constant 0 : i32
    %c0_i32_0 = arith.constant 0 : i32
    %c0_i32_1 = arith.constant 0 : i32
    return %c0_i32, %c0_i32_0 : i32, i32
  }
  func.func @transform_6(%arg0: i32) -> (i32, i32) {
    %c0_i32 = arith.constant 0 : i32
    %c0_i32_0 = arith.constant 0 : i32
    %c0_i32_1 = arith.constant 0 : i32
    return %c0_i32, %c0_i32_0 : i32, i32
  }
  func.func @transform_7(%arg0: i32) -> (i32, i32) {
    %c0_i32 = arith.constant 0 : i32
    %c0_i32_0 = arith.constant 0 : i32
    %c0_i32_1 = arith.constant 0 : i32
    return %c0_i32, %c0_i32_0 : i32, i32
  }
  func.func @transform_8(%arg0: i32) -> (i32, i32) {
    %c0_i32 = arith.constant 0 : i32
    %c0_i32_0 = arith.constant 0 : i32
    %c0_i32_1 = arith.constant 0 : i32
    return %c0_i32, %c0_i32_0 : i32, i32
  }
  func.func @transform_9(%arg0: i32) -> (i32, i32) {
    %c0_i32 = arith.constant 0 : i32
    %c0_i32_0 = arith.constant 0 : i32
    %c0_i32_1 = arith.constant 0 : i32
    return %c0_i32, %c0_i32_0 : i32, i32
  }
  func.func @transform_10(%arg0: i32) -> (i32, i32) {
    %c0_i32 = arith.constant 0 : i32
    %c0_i32_0 = arith.constant 0 : i32
    return %arg0, %c0_i32 : i32, i32
  }
}

</mosaic_0001>

<llo_original>
// kernel: tpu_custom_call.1
$region0: #{tpu_custom_call.1}
  #allocation0 [shape = 'u32[]', space=smem, size = 0x4, offset = 0x4, fixed_abs, tag = 'smem constant byte address 0x4 - core index']
  #allocation1 [shape = 'u32[144,128]{1,0:T(1,128)}', space=vmem, size = 0x12000, scoped, tag = 'internal scratch']
  #allocation2 [shape = 'f32[8,32]{1,0:T(8,128)}', space=vmem, size = 0x1000, scoped, tag = 'scratch operand']
  %s0 = inlined_call_operand.hbm [shape: f32[16,32], index: 0, kind: input, shape index: {}]
  %s1 = inlined_call_operand.hbm [shape: f32[32,32], index: 1, kind: input, shape index: {}]
  %s2 = inlined_call_operand.vmem [shape: f32[1,32], index: 2, kind: input, shape index: {}]
  %s3 = inlined_call_operand.hbm [shape: f32[32,32], index: 3, kind: input, shape index: {}]
  %s4 = inlined_call_operand.vmem [shape: f32[1,32], index: 4, kind: input, shape index: {}]
  %s5 = inlined_call_operand.hbm [shape: f32[32,32], index: 5, kind: input, shape index: {}]
  %s6 = inlined_call_operand.hbm [shape: f32[1,32], index: 6, kind: input, shape index: {}]
  %s7 = inlined_call_operand.vmem [shape: f32[8,8], index: 7, kind: input, shape index: {}]
  %s8 = inlined_call_operand.vmem [shape: f32[8,8], index: 8, kind: input, shape index: {}]
  %s9 = inlined_call_operand.vmem [shape: f32[8,8], index: 9, kind: input, shape index: {}]
  %s10 = inlined_call_operand.hbm [shape: f32[16,32], index: 10, kind: output, shape index: {}]
  %s11 = sld [smem:[#allocation0]]
  $region93: #{tpu_custom_call.1} parent=0
    _
  %s13 = ssub.s32 1, %s11
  %s14 = scalar_select 0, %s13, %s11
  $region1: #{tpu_custom_call.1} parent=0
    #allocation3 [shape = 'u8[8192]{0}', space=vmem, size = 0x2000, scoped, tag = 'input window, operand 0']
    #allocation4 [shape = 's32[2]{0}', space=sflag, size = 0x8, scoped, tag = 'scoped memory for tpu_custom_call.1']
    #allocation5 [shape = 's32[2]{0}', space=sflag, size = 0x8, scoped, tag = 'scoped memory for tpu_custom_call.1']
    #allocation6 [shape = 'u8[16384]{0}', space=vmem, size = 0x4000, scoped, tag = 'input window, operand 1, single buffered']
    #allocation7 [shape = 's32[1]{0}', space=sflag, size = 0x4, scoped, tag = 'scoped memory for tpu_custom_call.1']
    #allocation8 [shape = 'u8[16384]{0}', space=vmem, size = 0x4000, scoped, tag = 'input window, operand 3, single buffered']
    #allocation9 [shape = 'u8[16384]{0}', space=vmem, size = 0x4000, scoped, tag = 'input window, operand 5, single buffered']
    #allocation10 [shape = 's32[1]{0}', space=sflag, size = 0x4, scoped, tag = 'scoped memory for tpu_custom_call.1']
    #allocation11 [shape = 'u8[512]{0}', space=vmem, size = 0x400, scoped, tag = 'input window, operand 6, single buffered']
    #allocation12 [shape = 'u8[8192]{0}', space=vmem, size = 0x2000, scoped, tag = 'output window, operand 0']
    %15 = vsyncpa [#allocation4], 0
    %s16 = scalar_lea.sflag [#allocation4], 1
    %17 = vsyncpa %s16, 0
    %18 = vsyncpa [#allocation7], 0
    %19 = vsyncpa [#allocation10], 0
    %20 = vsyncpa [#allocation5], 0
    %s21 = scalar_lea.sflag [#allocation5], 1
    %22 = vsyncpa %s21, 0
    loop: start=0, step=1, limit=4
    $region2: #{tpu_custom_call.1} parent=1 // loop_pre_header
      _
    $region3: #{tpu_custom_call.1} parent=1 // loop_header
      %s24 = sphi 0, %s28
      %p25 = scmp.ge.s32.totalorder %s24, 4
      %s34 = sphi 0, %s36
      %s37 = sphi 0, %s34
      %s38 = sphi 0, %s37
      %s54 = sphi 0, %s38
      %s58 = sphi 0, %s58
      %s60 = sphi 0, %s58
      %s61 = sphi 0, %s60
      %s75 = sphi 0, %s61
      %s79 = sphi 0, %s79
      %s81 = sphi 0, %s79
      %s82 = sphi 0, %s81
      %s96 = sphi 0, %s82
      %s100 = sphi 0, %s100
      %s102 = sphi 0, %s100
      %s103 = sphi 0, %s102
      %s117 = sphi 0, %s103
      %s121 = sphi 0, %s121
      %s123 = sphi 0, %s121
      %s124 = sphi 0, %s123
      %s138 = sphi 0, %s124
      %s142 = sphi 0, %s142
      %s144 = sphi 0, %s142
      %s145 = sphi 0, %s144
      %s159 = sphi 0, %s145
      %s163 = sphi 0, %s163
      %s165 = sphi 0, %s163
      %s166 = sphi 0, %s165
      %s180 = sphi 0, %s166
      %s184 = sphi 0, %s184
      %s186 = sphi 0, %s184
      %s187 = sphi 0, %s186
      %s201 = sphi 0, %s187
      %s205 = sphi 0, %s205
      %s207 = sphi 0, %s205
      %s208 = sphi 0, %s207
      %s222 = sphi 0, %s208
      %s226 = sphi 0, %s226
      %s228 = sphi 0, %s226
      %s229 = sphi 0, %s228
      %s243 = sphi 0, %s229
      %s249 = sphi 0, %s251
      %s252 = sphi 0, %s249
      %s253 = sphi 0, %s252
      %s269 = sphi 0, %s253
    $region4: #{tpu_custom_call.1} parent=1 // loop_header_branch
      %27 = sbr.rel (%p25) target = $region8
    $region5: #{tpu_custom_call.1} parent=1 // loop_body
      %s29 = ssub.s32 %s24, 1
      %s30 = ssub.s32 %s24, 2
      %s31 = sadd.s32 %s24, 1
      %s32 = ssub.s32 %s24, %s31
      %p33 = scmp.eq.s32.totalorder %s32, 0
      %s35 = sadd.s32 %s34, 1
      %s36 = scalar_select %p33, %s34, %s35
      %p39 = pneg %p33
      %p40 = scmp.eq.s32.totalorder %s24, 1
      %p41 = por %p39, %p40
      %p42 = scmp.ne.s32.totalorder %s34, %s37
      %p43 = scmp.eq.s32.totalorder %s24, 0
      %p44 = por %p42, %p43
      %p45 = scmp.ne.s32.totalorder %s34, %s37
      %p46 = scmp.eq.s32.totalorder %s29, 1
      %p47 = por %p45, %p46
      %p48 = scmp.ne.s32.totalorder %s37, %s38
      %p49 = scmp.eq.s32.totalorder %s29, 0
      %p50 = por %p48, %p49
      %p51 = scmp.ne.s32.totalorder %s37, %s38
      %p52 = scmp.eq.s32.totalorder %s30, 1
      %p53 = por %p51, %p52
      %p55 = scmp.ne.s32.totalorder %s38, %s54
      %p56 = scmp.eq.s32.totalorder %s30, 0
      %p57 = por %p55, %p56
      %s59 = sadd.s32 %s58, 1
      %p62 = scmp.eq.s32.totalorder %s24, 1
      %p63 = scmp.ne.s32.totalorder %s58, %s60
      %p64 = scmp.eq.s32.totalorder %s24, 0
      %p65 = por %p63, %p64
      %p66 = scmp.ne.s32.totalorder %s58, %s60
      %p67 = scmp.eq.s32.totalorder %s29, 1
      %p68 = por %p66, %p67
      %p69 = scmp.ne.s32.totalorder %s60, %s61
      %p70 = scmp.eq.s32.totalorder %s29, 0
      %p71 = por %p69, %p70
      %p72 = scmp.ne.s32.totalorder %s60, %s61
      %p73 = scmp.eq.s32.totalorder %s30, 1
      %p74 = por %p72, %p73
      %p76 = scmp.ne.s32.totalorder %s61, %s75
      %p77 = scmp.eq.s32.totalorder %s30, 0
      %p78 = por %p76, %p77
      %s80 = sadd.s32 %s79, 1
      %p83 = scmp.eq.s32.totalorder %s24, 1
      %p84 = scmp.ne.s32.totalorder %s79, %s81
      %p85 = scmp.eq.s32.totalorder %s24, 0
      %p86 = por %p84, %p85
      %p87 = scmp.ne.s32.totalorder %s79, %s81
      %p88 = scmp.eq.s32.totalorder %s29, 1
      %p89 = por %p87, %p88
      %p90 = scmp.ne.s32.totalorder %s81, %s82
      %p91 = scmp.eq.s32.totalorder %s29, 0
      %p92 = por %p90, %p91
      %p93 = scmp.ne.s32.totalorder %s81, %s82
      %p94 = scmp.eq.s32.totalorder %s30, 1
      %p95 = por %p93, %p94
      %p97 = scmp.ne.s32.totalorder %s82, %s96
      %p98 = scmp.eq.s32.totalorder %s30, 0
      %p99 = por %p97, %p98
      %s101 = sadd.s32 %s100, 1
      %p104 = scmp.eq.s32.totalorder %s24, 1
      %p105 = scmp.ne.s32.totalorder %s100, %s102
      %p106 = scmp.eq.s32.totalorder %s24, 0
      %p107 = por %p105, %p106
      %p108 = scmp.ne.s32.totalorder %s100, %s102
      %p109 = scmp.eq.s32.totalorder %s29, 1
      %p110 = por %p108, %p109
      %p111 = scmp.ne.s32.totalorder %s102, %s103
      %p112 = scmp.eq.s32.totalorder %s29, 0
      %p113 = por %p111, %p112
      %p114 = scmp.ne.s32.totalorder %s102, %s103
      %p115 = scmp.eq.s32.totalorder %s30, 1
      %p116 = por %p114, %p115
      %p118 = scmp.ne.s32.totalorder %s103, %s117
      %p119 = scmp.eq.s32.totalorder %s30, 0
      %p120 = por %p118, %p119
      %s122 = sadd.s32 %s121, 1
      %p125 = scmp.eq.s32.totalorder %s24, 1
      %p126 = scmp.ne.s32.totalorder %s121, %s123
      %p127 = scmp.eq.s32.totalorder %s24, 0
      %p128 = por %p126, %p127
      %p129 = scmp.ne.s32.totalorder %s121, %s123
      %p130 = scmp.eq.s32.totalorder %s29, 1
      %p131 = por %p129, %p130
      %p132 = scmp.ne.s32.totalorder %s123, %s124
      %p133 = scmp.eq.s32.totalorder %s29, 0
      %p134 = por %p132, %p133
      %p135 = scmp.ne.s32.totalorder %s123, %s124
      %p136 = scmp.eq.s32.totalorder %s30, 1
      %p137 = por %p135, %p136
      %p139 = scmp.ne.s32.totalorder %s124, %s138
      %p140 = scmp.eq.s32.totalorder %s30, 0
      %p141 = por %p139, %p140
      %s143 = sadd.s32 %s142, 1
      %p146 = scmp.eq.s32.totalorder %s24, 1
      %p147 = scmp.ne.s32.totalorder %s142, %s144
      %p148 = scmp.eq.s32.totalorder %s24, 0
      %p149 = por %p147, %p148
      %p150 = scmp.ne.s32.totalorder %s142, %s144
      %p151 = scmp.eq.s32.totalorder %s29, 1
      %p152 = por %p150, %p151
      %p153 = scmp.ne.s32.totalorder %s144, %s145
      %p154 = scmp.eq.s32.totalorder %s29, 0
      %p155 = por %p153, %p154
      %p156 = scmp.ne.s32.totalorder %s144, %s145
      %p157 = scmp.eq.s32.totalorder %s30, 1
      %p158 = por %p156, %p157
      %p160 = scmp.ne.s32.totalorder %s145, %s159
      %p161 = scmp.eq.s32.totalorder %s30, 0
      %p162 = por %p160, %p161
      %s164 = sadd.s32 %s163, 1
      %p167 = scmp.eq.s32.totalorder %s24, 1
      %p168 = scmp.ne.s32.totalorder %s163, %s165
      %p169 = scmp.eq.s32.totalorder %s24, 0
      %p170 = por %p168, %p169
      %p171 = scmp.ne.s32.totalorder %s163, %s165
      %p172 = scmp.eq.s32.totalorder %s29, 1
      %p173 = por %p171, %p172
      %p174 = scmp.ne.s32.totalorder %s165, %s166
      %p175 = scmp.eq.s32.totalorder %s29, 0
      %p176 = por %p174, %p175
      %p177 = scmp.ne.s32.totalorder %s165, %s166
      %p178 = scmp.eq.s32.totalorder %s30, 1
      %p179 = por %p177, %p178
      %p181 = scmp.ne.s32.totalorder %s166, %s180
      %p182 = scmp.eq.s32.totalorder %s30, 0
      %p183 = por %p181, %p182
      %s185 = sadd.s32 %s184, 1
      %p188 = scmp.eq.s32.totalorder %s24, 1
      %p189 = scmp.ne.s32.totalorder %s184, %s186
      %p190 = scmp.eq.s32.totalorder %s24, 0
      %p191 = por %p189, %p190
      %p192 = scmp.ne.s32.totalorder %s184, %s186
      %p193 = scmp.eq.s32.totalorder %s29, 1
      %p194 = por %p192, %p193
      %p195 = scmp.ne.s32.totalorder %s186, %s187
      %p196 = scmp.eq.s32.totalorder %s29, 0
      %p197 = por %p195, %p196
      %p198 = scmp.ne.s32.totalorder %s186, %s187
      %p199 = scmp.eq.s32.totalorder %s30, 1
      %p200 = por %p198, %p199
      %p202 = scmp.ne.s32.totalorder %s187, %s201
      %p203 = scmp.eq.s32.totalorder %s30, 0
      %p204 = por %p202, %p203
      %s206 = sadd.s32 %s205, 1
      %p209 = scmp.eq.s32.totalorder %s24, 1
      %p210 = scmp.ne.s32.totalorder %s205, %s207
      %p211 = scmp.eq.s32.totalorder %s24, 0
      %p212 = por %p210, %p211
      %p213 = scmp.ne.s32.totalorder %s205, %s207
      %p214 = scmp.eq.s32.totalorder %s29, 1
      %p215 = por %p213, %p214
      %p216 = scmp.ne.s32.totalorder %s207, %s208
      %p217 = scmp.eq.s32.totalorder %s29, 0
      %p218 = por %p216, %p217
      %p219 = scmp.ne.s32.totalorder %s207, %s208
      %p220 = scmp.eq.s32.totalorder %s30, 1
      %p221 = por %p219, %p220
      %p223 = scmp.ne.s32.totalorder %s208, %s222
      %p224 = scmp.eq.s32.totalorder %s30, 0
      %p225 = por %p223, %p224
      %s227 = sadd.s32 %s226, 1
      %p230 = scmp.eq.s32.totalorder %s24, 1
      %p231 = scmp.ne.s32.totalorder %s226, %s228
      %p232 = scmp.eq.s32.totalorder %s24, 0
      %p233 = por %p231, %p232
      %p234 = scmp.ne.s32.totalorder %s226, %s228
      %p235 = scmp.eq.s32.totalorder %s29, 1
      %p236 = por %p234, %p235
      %p237 = scmp.ne.s32.totalorder %s228, %s229
      %p238 = scmp.eq.s32.totalorder %s29, 0
      %p239 = por %p237, %p238
      %p240 = scmp.ne.s32.totalorder %s228, %s229
      %p241 = scmp.eq.s32.totalorder %s30, 1
      %p242 = por %p240, %p241
      %p244 = scmp.ne.s32.totalorder %s229, %s243
      %p245 = scmp.eq.s32.totalorder %s30, 0
      %p246 = por %p244, %p245
      %s247 = ssub.s32 %s24, %s31
      %p248 = scmp.eq.s32.totalorder %s247, 0
      %s250 = sadd.s32 %s249, 1
      %s251 = scalar_select %p248, %s249, %s250
      %p254 = pneg %p248
      %p255 = scmp.eq.s32.totalorder %s24, 1
      %p256 = por %p254, %p255
      %p257 = scmp.ne.s32.totalorder %s249, %s252
      %p258 = scmp.eq.s32.totalorder %s24, 0
      %p259 = por %p257, %p258
      %p260 = scmp.ne.s32.totalorder %s249, %s252
      %p261 = scmp.eq.s32.totalorder %s29, 1
      %p262 = por %p260, %p261
      %p263 = scmp.ne.s32.totalorder %s252, %s253
      %p264 = scmp.eq.s32.totalorder %s29, 0
      %p265 = por %p263, %p264
      %p266 = scmp.ne.s32.totalorder %s252, %s253
      %p267 = scmp.eq.s32.totalorder %s30, 1
      %p268 = por %p266, %p267
      %p270 = scmp.ne.s32.totalorder %s253, %s269
      %p271 = scmp.eq.s32.totalorder %s30, 0
      %p272 = por %p270, %p271
      %p273 = scmp.le.s32.totalorder 1, %s24
      %p274 = scmp.lt.s32.totalorder %s24, 3
      %p275 = pnand %p273, %p274
      %p276 = pneg %p275
      // Predicated region
      $region9: #{tpu_custom_call.1} parent=5 // pred_check
        _
      $region10: #{tpu_custom_call.1} parent=5 // pred_check_branch
        %278 = sbr.rel (%p275) target = $region12
      $region11: #{tpu_custom_call.1} parent=5 // pred_region
        %s279 = ssub.s32 %s24, 1
        // Predicated region
        $region13: #{tpu_custom_call.1} parent=11 // pred_check
          %p280 = pneg %p71
        $region14: #{tpu_custom_call.1} parent=11 // pred_check_branch
          %282 = sbr.rel (%p280) target = $region16
        $region15: #{tpu_custom_call.1} parent=11 // pred_region
          %s284 = ssub.s32 512, 512
          %285 = vsyncadd [#allocation7], %s284
          %s286 = sshll.u32 [#allocation6], 4
          %s287 = int_to_ptr.vmem [resolvable:$true] %s286
          %292 = dma.hbm_to_vmem [thread:$0]  %s1, 512, %s287, [#allocation7], 128, 128, 8
        $region16: #{tpu_custom_call.1} parent=11 // pred_fallthru
          _
        // Predicated region
        $region17: #{tpu_custom_call.1} parent=11 // pred_check
          %p293 = pneg %p92
        $region18: #{tpu_custom_call.1} parent=11 // pred_check_branch
          %295 = sbr.rel (%p293) target = $region20
        $region19: #{tpu_custom_call.1} parent=11 // pred_region
          _
        $region20: #{tpu_custom_call.1} parent=11 // pred_fallthru
          _
        // Predicated region
        $region21: #{tpu_custom_call.1} parent=11 // pred_check
          %p296 = pneg %p113
        $region22: #{tpu_custom_call.1} parent=11 // pred_check_branch
          %298 = sbr.rel (%p296) target = $region24
        $region23: #{tpu_custom_call.1} parent=11 // pred_region
          %s300 = ssub.s32 512, 512
          %301 = vsyncadd [#allocation7], %s300
          %s302 = sshll.u32 [#allocation8], 4
          %s303 = int_to_ptr.vmem [resolvable:$true] %s302
          %308 = dma.hbm_to_vmem [thread:$0]  %s3, 512, %s303, [#allocation7], 128, 128, 8
        $region24: #{tpu_custom_call.1} parent=11 // pred_fallthru
          _
        // Predicated region
        $region25: #{tpu_custom_call.1} parent=11 // pred_check
          %p309 = pneg %p134
        $region26: #{tpu_custom_call.1} parent=11 // pred_check_branch
          %311 = sbr.rel (%p309) target = $region28
        $region27: #{tpu_custom_call.1} parent=11 // pred_region
          _
        $region28: #{tpu_custom_call.1} parent=11 // pred_fallthru
          _
        // Predicated region
        $region29: #{tpu_custom_call.1} parent=11 // pred_check
          %p312 = pneg %p155
        $region30: #{tpu_custom_call.1} parent=11 // pred_check_branch
          %314 = sbr.rel (%p312) target = $region32
        $region31: #{tpu_custom_call.1} parent=11 // pred_region
          %s316 = ssub.s32 512, 512
          %317 = vsyncadd [#allocation10], %s316
          %s318 = sshll.u32 [#allocation9], 4
          %s319 = int_to_ptr.vmem [resolvable:$true] %s318
          %324 = dma.hbm_to_vmem [thread:$0]  %s5, 512, %s319, [#allocation10], 128, 128, 8
        $region32: #{tpu_custom_call.1} parent=11 // pred_fallthru
          _
        // Predicated region
        $region33: #{tpu_custom_call.1} parent=11 // pred_check
          %p325 = pneg %p176
        $region34: #{tpu_custom_call.1} parent=11 // pred_check_branch
          %327 = sbr.rel (%p325) target = $region36
        $region35: #{tpu_custom_call.1} parent=11 // pred_region
          %s329 = ssub.s32 16, 16
          %330 = vsyncadd [#allocation10], %s329
          %s332 = sshll.u32 [#allocation11], 4
          %s333 = int_to_ptr.vmem [resolvable:$true] %s332
          %335 = dma.hbm_to_vmem [thread:$0]  %s6, 16, %s333, [#allocation10]
        $region36: #{tpu_custom_call.1} parent=11 // pred_fallthru
          _
        // Predicated region
        $region37: #{tpu_custom_call.1} parent=11 // pred_check
          %p336 = pneg %p197
        $region38: #{tpu_custom_call.1} parent=11 // pred_check_branch
          %338 = sbr.rel (%p336) target = $region40
        $region39: #{tpu_custom_call.1} parent=11 // pred_region
          _
        $region40: #{tpu_custom_call.1} parent=11 // pred_fallthru
          _
        // Predicated region
        $region41: #{tpu_custom_call.1} parent=11 // pred_check
          %p339 = pneg %p218
        $region42: #{tpu_custom_call.1} parent=11 // pred_check_branch
          %341 = sbr.rel (%p339) target = $region44
        $region43: #{tpu_custom_call.1} parent=11 // pred_region
          _
        $region44: #{tpu_custom_call.1} parent=11 // pred_fallthru
          _
        // Predicated region
        $region45: #{tpu_custom_call.1} parent=11 // pred_check
          %p342 = pneg %p239
        $region46: #{tpu_custom_call.1} parent=11 // pred_check_branch
          %344 = sbr.rel (%p342) target = $region48
        $region47: #{tpu_custom_call.1} parent=11 // pred_region
          _
        $region48: #{tpu_custom_call.1} parent=11 // pred_fallthru
          _
      $region12: #{tpu_custom_call.1} parent=5 // pred_fallthru
        _
      %p345 = scmp.lt.s32.totalorder %s24, 2
      // Predicated region
      $region49: #{tpu_custom_call.1} parent=5 // pred_check
        %p346 = pneg %p345
      $region50: #{tpu_custom_call.1} parent=5 // pred_check_branch
        %348 = sbr.rel (%p346) target = $region52
      $region51: #{tpu_custom_call.1} parent=5 // pred_region
        // Predicated region
        $region53: #{tpu_custom_call.1} parent=51 // pred_check
          %p349 = pneg %p44
        $region54: #{tpu_custom_call.1} parent=51 // pred_check_branch
          %351 = sbr.rel (%p349) target = $region56
        $region55: #{tpu_custom_call.1} parent=51 // pred_region
          %s352 = sand.u32 %s34, 1
          %s353 = scalar_lea.sflag [#allocation4], %s352
          %s354 = sand.u32 %s34, 1
          %s355 = smul.addr %s354, 8
          %s356 = scalar_lea.vmem [#allocation3], %s355
          %s358 = ssub.s32 128, 128
          %359 = vsyncadd %s353, %s358
          %s360 = smul.addr %s24, 128
          %s361 = scalar_lea.hbm %s0, %s360
          %s363 = sshll.u32 %s356, 4
          %s364 = int_to_ptr.vmem [resolvable:$true] %s363
          %366 = dma.hbm_to_vmem [thread:$0]  %s361, 128, %s364, %s353
        $region56: #{tpu_custom_call.1} parent=51 // pred_fallthru
          _
      $region52: #{tpu_custom_call.1} parent=5 // pred_fallthru
        _
      %p367 = scmp.le.s32.totalorder 1, %s24
      %p368 = scmp.lt.s32.totalorder %s24, 3
      %p369 = pnand %p367, %p368
      %p370 = pneg %p369
      // Predicated region
      $region57: #{tpu_custom_call.1} parent=5 // pred_check
        _
      $region58: #{tpu_custom_call.1} parent=5 // pred_check_branch
        %372 = sbr.rel (%p369) target = $region60
      $region59: #{tpu_custom_call.1} parent=5 // pred_region
        %s373 = ssub.s32 %s24, 1
        %s374 = sand.u32 %s37, 1
        %s375 = scalar_lea.sflag [#allocation4], %s374
        %s376 = sand.u32 %s37, 1
        %s377 = smul.addr %s376, 8
        %s378 = scalar_lea.vmem [#allocation3], %s377
        // Predicated region
        $region61: #{tpu_custom_call.1} parent=59 // pred_check
          %p379 = pneg %p50
        $region62: #{tpu_custom_call.1} parent=59 // pred_check_branch
          %381 = sbr.rel (%p379) target = $region64
        $region63: #{tpu_custom_call.1} parent=59 // pred_region
          %382 = dma.done %s375, 128
        $region64: #{tpu_custom_call.1} parent=59 // pred_fallthru
          _
        // Predicated region
        $region65: #{tpu_custom_call.1} parent=59 // pred_check
          %p383 = pneg %p71
        $region66: #{tpu_custom_call.1} parent=59 // pred_check_branch
          %385 = sbr.rel (%p383) target = $region68
        $region67: #{tpu_custom_call.1} parent=59 // pred_region
          %386 = dma.done [#allocation7], 512
        $region68: #{tpu_custom_call.1} parent=59 // pred_fallthru
          _
        // Predicated region
        $region69: #{tpu_custom_call.1} parent=59 // pred_check
          %p387 = pneg %p113
        $region70: #{tpu_custom_call.1} parent=59 // pred_check_branch
          %389 = sbr.rel (%p387) target = $region72
        $region71: #{tpu_custom_call.1} parent=59 // pred_region
          %390 = dma.done [#allocation7], 512
        $region72: #{tpu_custom_call.1} parent=59 // pred_fallthru
          _
        // Predicated region
        $region73: #{tpu_custom_call.1} parent=59 // pred_check
          %p391 = pneg %p155
        $region74: #{tpu_custom_call.1} parent=59 // pred_check_branch
          %393 = sbr.rel (%p391) target = $region76
        $region75: #{tpu_custom_call.1} parent=59 // pred_region
          %394 = dma.done [#allocation10], 512
        $region76: #{tpu_custom_call.1} parent=59 // pred_fallthru
          _
        // Predicated region
        $region77: #{tpu_custom_call.1} parent=59 // pred_check
          %p395 = pneg %p176
        $region78: #{tpu_custom_call.1} parent=59 // pred_check_branch
          %397 = sbr.rel (%p395) target = $region80
        $region79: #{tpu_custom_call.1} parent=59 // pred_region
          %398 = dma.done [#allocation10], 16
        $region80: #{tpu_custom_call.1} parent=59 // pred_fallthru
          _
        %s399 = sand.u32 %s37, 1
        %s400 = scalar_lea.sflag [#allocation4], %s399
        %s401 = sand.u32 %s37, 1
        %s402 = smul.addr %s401, 8
        %s403 = scalar_lea.vmem [#allocation3], %s402
        %p404 = pneg %p50
        %p405 = pneg %p47
        %p406 = pneg %p71
        %p407 = pneg %p68
        %p408 = pneg %p92
        %p409 = pneg %p89
        %p410 = pneg %p113
        %p411 = pneg %p110
        %p412 = pneg %p134
        %p413 = pneg %p131
        %p414 = pneg %p155
        %p415 = pneg %p152
        %p416 = pneg %p176
        %p417 = pneg %p173
        %p418 = pneg %p197
        %p419 = pneg %p194
        %p420 = pneg %p218
        %p421 = pneg %p215
        %p422 = pneg %p239
        %p423 = pneg %p236
        %p424 = pneg %p265
        %p425 = pneg %p262
        %s426 = sand.u32 %s252, 1
        %s427 = scalar_lea.sflag [#allocation5], %s426
        %s428 = sand.u32 %s252, 1
        %s429 = smul.addr %s428, 8
        %s430 = scalar_lea.vmem [#allocation12], %s429
        %v431 = vld [vmem:[%s378] sm:$0xff]
        %v432 = vld [vmem:[#allocation6] sm:$0xff]
        %v433 = vld [vmem:[#allocation6 + $0x8] sm:$0xff]
        %v434 = vld [vmem:[#allocation6 + $0x10] sm:$0xff]
        %v435 = vld [vmem:[#allocation6 + $0x18] sm:$0xff]
        %v436 = vld [vmem:[%s2] sm:$0x1]
        %v438 = vlaneseq
        %v439 = vshrl.u32 %v438, 7
        %v440 = vsub.s32 0, %v439
        %v441 = vrot.slane %v436, %v440
        %vm443 = vcmask 261120
        %v445 = vsel %vm443, %v431, 0
        %447 = vmatprep.subr.mxu0 0.0
        %448 = vmatpush1.msra.mxu0 %v432
        %449 = vmatprep.subr.mxu0 0.0
        %450 = vmatpush1.msra.mxu0 %v433
        %451 = vmatprep.subr.mxu0 0.0
        %452 = vmatpush1.msra.mxu0 %v434
        %453 = vmatprep.subr.mxu0 0.0
        %454 = vmatpush1.msra.mxu0 %v435
        %455 = vmatprep.subr.mxu0 0.0
        %456 = vmatpush1.msra.mxu0 0.0
        %457 = vmatprep.subr.mxu0 0.0
        %458 = vmatpush1.msra.mxu0 0.0
        %459 = vmatprep.subr.mxu0 0.0
        %460 = vmatpush1.msra.mxu0 0.0
        %461 = vmatprep.subr.mxu0 0.0
        %462 = vmatpush1.msra.mxu0 0.0
        %463 = vmatprep.subr.mxu0 0.0
        %464 = vmatpush1.msra.mxu0 0.0
        %465 = vmatprep.subr.mxu0 0.0
        %466 = vmatpush1.msra.mxu0 0.0
        %467 = vmatprep.subr.mxu0 0.0
        %468 = vmatpush1.msra.mxu0 0.0
        %469 = vmatprep.subr.mxu0 0.0
        %470 = vmatpush1.msra.mxu0 0.0
        %471 = vmatprep.subr.mxu0 0.0
        %472 = vmatpush1.msra.mxu0 0.0
        %473 = vmatprep.subr.mxu0 0.0
        %474 = vmatpush1.msra.mxu0 0.0
        %475 = vmatprep.subr.mxu0 0.0
        %476 = vmatpush1.msra.mxu0 0.0
        %477 = vmatprep.subr.mxu0 0.0
        %478 = vmatpush1.msra.mxu0 0.0
        %479 = vmatprep.subr.mxu0 0.0
        %480 = vmatpush1.msra.mxu0 0.0
        %481 = vmatprep.subr.mxu0 0.0
        %482 = vmatpush1.msra.mxu0 0.0
        %483 = vmatprep.subr.mxu0 0.0
        %484 = vmatpush1.msra.mxu0 0.0
        %485 = vmatprep.subr.mxu0 0.0
        %486 = vmatpush1.msra.mxu0 0.0
        %487 = vmatprep.subr.mxu0 0.0
        %488 = vmatpush1.msra.mxu0 0.0
        %489 = vmatprep.subr.mxu0 0.0
        %490 = vmatpush1.msra.mxu0 0.0
        %491 = vmatprep.subr.mxu0 0.0
        %492 = vmatpush1.msra.mxu0 0.0
        %493 = vmatprep.subr.mxu0 0.0
        %494 = vmatpush1.msra.mxu0 0.0
        %495 = vmatprep.subr.mxu0 0.0
        %496 = vmatpush1.msra.mxu0 0.0
        %497 = vmatprep.subr.mxu0 0.0
        %498 = vmatpush1.msra.mxu0 0.0
        %499 = vmatprep.subr.mxu0 0.0
        %500 = vmatpush1.msra.mxu0 0.0
        %501 = vmatprep.subr.mxu0 0.0
        %502 = vmatpush1.msra.mxu0 0.0
        %503 = vmatprep.subr.mxu0 0.0
        %504 = vmatpush1.msra.mxu0 0.0
        %505 = vmatprep.subr.mxu0 0.0
        %506 = vmatpush1.msra.mxu0 0.0
        %507 = vmatprep.subr.mxu0 0.0
        %508 = vmatpush1.msra.mxu0 0.0
        %509 = vmatprep.subr.mxu0 0.0
        %510 = vmatpush1.msra.mxu0 0.0
        %511 = vmatprep.mubr.f32.mxu0 0.0
        %512 = vmatmul.mubr.f32.gmra.mrb[0].mxu0 %v445
        %v513 = vpop.f32.mrb[0].mxu0
        %v514 = vadd.f32 %v441, %v513
        %v515 = vpop.f32.mrb[0].mxu0
        %516 = vdwg.mxu0
        %v517 = vld [vmem:[#allocation8] sm:$0xff]
        %v518 = vld [vmem:[#allocation8 + $0x8] sm:$0xff]
        %v519 = vld [vmem:[#allocation8 + $0x10] sm:$0xff]
        %v520 = vld [vmem:[#allocation8 + $0x18] sm:$0xff]
        %v521 = vld [vmem:[%s4] sm:$0x1]
        %v523 = vlaneseq
        %v524 = vshrl.u32 %v523, 7
        %v525 = vsub.s32 0, %v524
        %v526 = vrot.slane %v521, %v525
        %528 = vmatprep.subr.mxu0 0.0
        %529 = vmatpush1.msra.mxu0 %v517
        %530 = vmatprep.subr.mxu0 0.0
        %531 = vmatpush1.msra.mxu0 %v518
        %532 = vmatprep.subr.mxu0 0.0
        %533 = vmatpush1.msra.mxu0 %v519
        %534 = vmatprep.subr.mxu0 0.0
        %535 = vmatpush1.msra.mxu0 %v520
        %536 = vmatprep.subr.mxu0 0.0
        %537 = vmatpush1.msra.mxu0 0.0
        %538 = vmatprep.subr.mxu0 0.0
        %539 = vmatpush1.msra.mxu0 0.0
        %540 = vmatprep.subr.mxu0 0.0
        %541 = vmatpush1.msra.mxu0 0.0
        %542 = vmatprep.subr.mxu0 0.0
        %543 = vmatpush1.msra.mxu0 0.0
        %544 = vmatprep.subr.mxu0 0.0
        %545 = vmatpush1.msra.mxu0 0.0
        %546 = vmatprep.subr.mxu0 0.0
        %547 = vmatpush1.msra.mxu0 0.0
        %548 = vmatprep.subr.mxu0 0.0
        %549 = vmatpush1.msra.mxu0 0.0
        %550 = vmatprep.subr.mxu0 0.0
        %551 = vmatpush1.msra.mxu0 0.0
        %552 = vmatprep.subr.mxu0 0.0
        %553 = vmatpush1.msra.mxu0 0.0
        %554 = vmatprep.subr.mxu0 0.0
        %555 = vmatpush1.msra.mxu0 0.0
        %556 = vmatprep.subr.mxu0 0.0
        %557 = vmatpush1.msra.mxu0 0.0
        %558 = vmatprep.subr.mxu0 0.0
        %559 = vmatpush1.msra.mxu0 0.0
        %560 = vmatprep.subr.mxu0 0.0
        %561 = vmatpush1.msra.mxu0 0.0
        %562 = vmatprep.subr.mxu0 0.0
        %563 = vmatpush1.msra.mxu0 0.0
        %564 = vmatprep.subr.mxu0 0.0
        %565 = vmatpush1.msra.mxu0 0.0
        %566 = vmatprep.subr.mxu0 0.0
        %567 = vmatpush1.msra.mxu0 0.0
        %568 = vmatprep.subr.mxu0 0.0
        %569 = vmatpush1.msra.mxu0 0.0
        %570 = vmatprep.subr.mxu0 0.0
        %571 = vmatpush1.msra.mxu0 0.0
        %572 = vmatprep.subr.mxu0 0.0
        %573 = vmatpush1.msra.mxu0 0.0
        %574 = vmatprep.subr.mxu0 0.0
        %575 = vmatpush1.msra.mxu0 0.0
        %576 = vmatprep.subr.mxu0 0.0
        %577 = vmatpush1.msra.mxu0 0.0
        %578 = vmatprep.subr.mxu0 0.0
        %579 = vmatpush1.msra.mxu0 0.0
        %580 = vmatprep.subr.mxu0 0.0
        %581 = vmatpush1.msra.mxu0 0.0
        %582 = vmatprep.subr.mxu0 0.0
        %583 = vmatpush1.msra.mxu0 0.0
        %584 = vmatprep.subr.mxu0 0.0
        %585 = vmatpush1.msra.mxu0 0.0
        %586 = vmatprep.subr.mxu0 0.0
        %587 = vmatpush1.msra.mxu0 0.0
        %588 = vmatprep.subr.mxu0 0.0
        %589 = vmatpush1.msra.mxu0 0.0
        %590 = vmatprep.subr.mxu0 0.0
        %591 = vmatpush1.msra.mxu0 0.0
        %592 = vmatprep.mubr.f32.mxu0 0.0
        %593 = vmatmul.mubr.f32.gmra.mrb[0].mxu0 %v445
        %v594 = vpop.f32.mrb[0].mxu0
        %v595 = vadd.f32 %v526, %v594
        %v596 = vpop.f32.mrb[0].mxu0
        %597 = vdwg.mxu0
        %v598 = vld [vmem:[#allocation9] sm:$0xff]
        %v599 = vld [vmem:[#allocation9 + $0x8] sm:$0xff]
        %v600 = vld [vmem:[#allocation9 + $0x10] sm:$0xff]
        %v601 = vld [vmem:[#allocation9 + $0x18] sm:$0xff]
        %v602 = vld [vmem:[#allocation11] sm:$0x1]
        %v604 = vlaneseq
        %v605 = vshrl.u32 %v604, 7
        %v606 = vsub.s32 0, %v605
        %v607 = vrot.slane %v602, %v606
        %609 = vmatprep.subr.mxu0 0.0
        %610 = vmatpush1.msra.mxu0 %v598
        %611 = vmatprep.subr.mxu0 0.0
        %612 = vmatpush1.msra.mxu0 %v599
        %613 = vmatprep.subr.mxu0 0.0
        %614 = vmatpush1.msra.mxu0 %v600
        %615 = vmatprep.subr.mxu0 0.0
        %616 = vmatpush1.msra.mxu0 %v601
        %617 = vmatprep.subr.mxu0 0.0
        %618 = vmatpush1.msra.mxu0 0.0
        %619 = vmatprep.subr.mxu0 0.0
        %620 = vmatpush1.msra.mxu0 0.0
        %621 = vmatprep.subr.mxu0 0.0
        %622 = vmatpush1.msra.mxu0 0.0
        %623 = vmatprep.subr.mxu0 0.0
        %624 = vmatpush1.msra.mxu0 0.0
        %625 = vmatprep.subr.mxu0 0.0
        %626 = vmatpush1.msra.mxu0 0.0
        %627 = vmatprep.subr.mxu0 0.0
        %628 = vmatpush1.msra.mxu0 0.0
        %629 = vmatprep.subr.mxu0 0.0
        %630 = vmatpush1.msra.mxu0 0.0
        %631 = vmatprep.subr.mxu0 0.0
        %632 = vmatpush1.msra.mxu0 0.0
        %633 = vmatprep.subr.mxu0 0.0
        %634 = vmatpush1.msra.mxu0 0.0
        %635 = vmatprep.subr.mxu0 0.0
        %636 = vmatpush1.msra.mxu0 0.0
        %637 = vmatprep.subr.mxu0 0.0
        %638 = vmatpush1.msra.mxu0 0.0
        %639 = vmatprep.subr.mxu0 0.0
        %640 = vmatpush1.msra.mxu0 0.0
        %641 = vmatprep.subr.mxu0 0.0
        %642 = vmatpush1.msra.mxu0 0.0
        %643 = vmatprep.subr.mxu0 0.0
        %644 = vmatpush1.msra.mxu0 0.0
        %645 = vmatprep.subr.mxu0 0.0
        %646 = vmatpush1.msra.mxu0 0.0
        %647 = vmatprep.subr.mxu0 0.0
        %648 = vmatpush1.msra.mxu0 0.0
        %649 = vmatprep.subr.mxu0 0.0
        %650 = vmatpush1.msra.mxu0 0.0
        %651 = vmatprep.subr.mxu0 0.0
        %652 = vmatpush1.msra.mxu0 0.0
        %653 = vmatprep.subr.mxu0 0.0
        %654 = vmatpush1.msra.mxu0 0.0
        %655 = vmatprep.subr.mxu0 0.0
        %656 = vmatpush1.msra.mxu0 0.0
        %657 = vmatprep.subr.mxu0 0.0
        %658 = vmatpush1.msra.mxu0 0.0
        %659 = vmatprep.subr.mxu0 0.0
        %660 = vmatpush1.msra.mxu0 0.0
        %661 = vmatprep.subr.mxu0 0.0
        %662 = vmatpush1.msra.mxu0 0.0
        %663 = vmatprep.subr.mxu0 0.0
        %664 = vmatpush1.msra.mxu0 0.0
        %665 = vmatprep.subr.mxu0 0.0
        %666 = vmatpush1.msra.mxu0 0.0
        %667 = vmatprep.subr.mxu0 0.0
        %668 = vmatpush1.msra.mxu0 0.0
        %669 = vmatprep.subr.mxu0 0.0
        %670 = vmatpush1.msra.mxu0 0.0
        %671 = vmatprep.subr.mxu0 0.0
        %672 = vmatpush1.msra.mxu0 0.0
        %673 = vmatprep.mubr.f32.mxu0 0.0
        %674 = vmatmul.mubr.f32.gmra.mrb[0].mxu0 %v445
        %v675 = vpop.f32.mrb[0].mxu0
        %v676 = vadd.f32 %v607, %v675
        %v677 = vpop.f32.mrb[0].mxu0
        %678 = vdwg.mxu0
        %v679 = vld [vmem:[%s7] sm:$0xff]
        %681 = vrot.lane.b32.xlu0 %v679, 8
        %v682 = vpop.permute.xlu0 %681
        %684 = vrot.lane.b32.xlu0 %v679, 16
        %v685 = vpop.permute.xlu0 %684
        %687 = vrot.lane.b32.xlu0 %v679, 24
        %v688 = vpop.permute.xlu0 %687
        %vm690 = vcmask 64512
        %v691 = vsel %vm690, %v679, %v682
        %vm692 = vcmask 130048
        %v693 = vsel %vm692, %v691, %v685
        %vm694 = vcmask 195584
        %v695 = vsel %vm694, %v693, %v688
        %v696 = vld [vmem:[%s8] sm:$0xff]
        %698 = vrot.lane.b32.xlu0 %v696, 8
        %v699 = vpop.permute.xlu0 %698
        %701 = vrot.lane.b32.xlu0 %v696, 16
        %v702 = vpop.permute.xlu0 %701
        %704 = vrot.lane.b32.xlu0 %v696, 24
        %v705 = vpop.permute.xlu0 %704
        %v707 = vsel %vm690, %v696, %v699
        %v708 = vsel %vm692, %v707, %v702
        %v709 = vsel %vm694, %v708, %v705
        %v710 = vld [vmem:[%s9] sm:$0xff]
        %712 = vrot.lane.b32.xlu0 %v710, 8
        %v713 = vpop.permute.xlu0 %712
        %715 = vrot.lane.b32.xlu0 %v710, 16
        %v716 = vpop.permute.xlu0 %715
        %718 = vrot.lane.b32.xlu0 %v710, 24
        %v719 = vpop.permute.xlu0 %718
        %v721 = vsel %vm690, %v710, %v713
        %v722 = vsel %vm692, %v721, %v716
        %v723 = vsel %vm694, %v722, %v719
        %725 = vrot.lane.b32.xlu0 %v514, 127
        %v726 = vpop.permute.xlu0 %725
        %728 = vrot.lane.b32.xlu0 %v514, 31
        %v729 = vpop.permute.xlu0 %728
        %vm731 = vcmask 252928
        %v732 = vsel %vm731, %v726, %v729
        %733 = vrot.lane.b32.xlu0 %v514, 97
        %v734 = vpop.permute.xlu0 %733
        %736 = vrot.lane.b32.xlu0 %v514, 1
        %v737 = vpop.permute.xlu0 %736
        %vm739 = vcmask 7168
        %v740 = vsel %vm739, %v734, %v737
        %v741 = vmul.f32 %v514, %v695
        %v742 = vmul.f32 %v732, %v709
        %v743 = vadd.f32 %v741, %v742
        %v744 = vmul.f32 %v740, %v723
        %v745 = vadd.f32 %v743, %v744
        %747 = vrot.lane.b32.xlu0 %v595, 127
        %v748 = vpop.permute.xlu0 %747
        %750 = vrot.lane.b32.xlu0 %v595, 31
        %v751 = vpop.permute.xlu0 %750
        %v753 = vsel %vm731, %v748, %v751
        %754 = vrot.lane.b32.xlu0 %v595, 97
        %v755 = vpop.permute.xlu0 %754
        %757 = vrot.lane.b32.xlu0 %v595, 1
        %v758 = vpop.permute.xlu0 %757
        %v760 = vsel %vm739, %v755, %v758
        %v761 = vmul.f32 %v595, %v695
        %v762 = vmul.f32 %v753, %v709
        %v763 = vadd.f32 %v761, %v762
        %v764 = vmul.f32 %v760, %v723
        %v765 = vadd.f32 %v763, %v764
        %v767 = vsel %vm690, %v745, 0
        %v770 = vsel %vm690, %v765, 0
        %772 = vmatprep.subr.mxu0 0.0
        %773 = vmatpush1.xpose.msra.mxu0 %v770
        %774 = vmatprep.subr.mxu0 0.0
        %775 = vmatpush1.xpose.msra.mxu0 0.0
        %776 = vmatprep.subr.mxu0 0.0
        %777 = vmatpush1.xpose.msra.mxu0 0.0
        %778 = vmatprep.subr.mxu0 0.0
        %779 = vmatpush1.xpose.msra.mxu0 0.0
        %780 = vmatprep.subr.mxu0 0.0
        %781 = vmatpush1.xpose.msra.mxu0 0.0
        %782 = vmatprep.subr.mxu0 0.0
        %783 = vmatpush1.xpose.msra.mxu0 0.0
        %784 = vmatprep.subr.mxu0 0.0
        %785 = vmatpush1.xpose.msra.mxu0 0.0
        %786 = vmatprep.subr.mxu0 0.0
        %787 = vmatpush1.xpose.msra.mxu0 0.0
        %788 = vmatprep.subr.mxu0 0.0
        %789 = vmatpush1.xpose.msra.mxu0 0.0
        %790 = vmatprep.subr.mxu0 0.0
        %791 = vmatpush1.xpose.msra.mxu0 0.0
        %792 = vmatprep.subr.mxu0 0.0
        %793 = vmatpush1.xpose.msra.mxu0 0.0
        %794 = vmatprep.subr.mxu0 0.0
        %795 = vmatpush1.xpose.msra.mxu0 0.0
        %796 = vmatprep.subr.mxu0 0.0
        %797 = vmatpush1.xpose.msra.mxu0 0.0
        %798 = vmatprep.subr.mxu0 0.0
        %799 = vmatpush1.xpose.msra.mxu0 0.0
        %800 = vmatprep.subr.mxu0 0.0
        %801 = vmatpush1.xpose.msra.mxu0 0.0
        %802 = vmatprep.subr.mxu0 0.0
        %803 = vmatpush1.xpose.msra.mxu0 0.0
        %804 = vmatprep.subr.mxu0 0.0
        %805 = vmatpush1.xpose.msra.mxu0 0.0
        %806 = vmatprep.subr.mxu0 0.0
        %807 = vmatpush1.xpose.msra.mxu0 0.0
        %808 = vmatprep.subr.mxu0 0.0
        %809 = vmatpush1.xpose.msra.mxu0 0.0
        %810 = vmatprep.subr.mxu0 0.0
        %811 = vmatpush1.xpose.msra.mxu0 0.0
        %812 = vmatprep.subr.mxu0 0.0
        %813 = vmatpush1.xpose.msra.mxu0 0.0
        %814 = vmatprep.subr.mxu0 0.0
        %815 = vmatpush1.xpose.msra.mxu0 0.0
        %816 = vmatprep.subr.mxu0 0.0
        %817 = vmatpush1.xpose.msra.mxu0 0.0
        %818 = vmatprep.subr.mxu0 0.0
        %819 = vmatpush1.xpose.msra.mxu0 0.0
        %820 = vmatprep.subr.mxu0 0.0
        %821 = vmatpush1.xpose.msra.mxu0 0.0
        %822 = vmatprep.subr.mxu0 0.0
        %823 = vmatpush1.xpose.msra.mxu0 0.0
        %824 = vmatprep.subr.mxu0 0.0
        %825 = vmatpush1.xpose.msra.mxu0 0.0
        %826 = vmatprep.subr.mxu0 0.0
        %827 = vmatpush1.xpose.msra.mxu0 0.0
        %828 = vmatprep.subr.mxu0 0.0
        %829 = vmatpush1.xpose.msra.mxu0 0.0
        %830 = vmatprep.subr.mxu0 0.0
        %831 = vmatpush1.xpose.msra.mxu0 0.0
        %832 = vmatprep.subr.mxu0 0.0
        %833 = vmatpush1.xpose.msra.mxu0 0.0
        %834 = vmatprep.subr.mxu0 0.0
        %835 = vmatpush1.xpose.msra.mxu0 0.0
        %836 = vmatprep.mubr.f32.mxu0 0.0
        %837 = vmatmul.mubr.f32.gmra.mrb[0].mxu0 %v767
        %v838 = vpop.f32.mrb[0].mxu0
        %v839 = vadd.f32 0.0, %v838
        %v840 = vpop.f32.mrb[0].mxu0
        %841 = vdwg.mxu0
        %v842 = vsel %vm690, %v839, -inf
        %843 = vmax.xlane.f32.xlu0 %v842
        %v844 = vpop.xlane.xlu0 %843
        %v845 = vsub.f32 %v839, %v844
        %v846 = vmul.f32 %v845, 1.442695
        %v847 = vpow.pop %v846
        %v848 = vsel %vm690, %v847, 0.0
        %849 = vadd.xlane.f32.xlu0 %v848
        %v850 = vpop.xlane.xlu0 %849
        %v852 = vsel %vm690, %v847, 0
        %854 = vmatprep.subr.mxu0 0.0
        %855 = vmatpush1.msra.mxu0 %v676
        %856 = vmatprep.subr.mxu0 0.0
        %857 = vmatpush1.msra.mxu0 0.0
        %858 = vmatprep.subr.mxu0 0.0
        %859 = vmatpush1.msra.mxu0 0.0
        %860 = vmatprep.subr.mxu0 0.0
        %861 = vmatpush1.msra.mxu0 0.0
        %862 = vmatprep.subr.mxu0 0.0
        %863 = vmatpush1.msra.mxu0 0.0
        %864 = vmatprep.subr.mxu0 0.0
        %865 = vmatpush1.msra.mxu0 0.0
        %866 = vmatprep.subr.mxu0 0.0
        %867 = vmatpush1.msra.mxu0 0.0
        %868 = vmatprep.subr.mxu0 0.0
        %869 = vmatpush1.msra.mxu0 0.0
        %870 = vmatprep.subr.mxu0 0.0
        %871 = vmatpush1.msra.mxu0 0.0
        %872 = vmatprep.subr.mxu0 0.0
        %873 = vmatpush1.msra.mxu0 0.0
        %874 = vmatprep.subr.mxu0 0.0
        %875 = vmatpush1.msra.mxu0 0.0
        %876 = vmatprep.subr.mxu0 0.0
        %877 = vmatpush1.msra.mxu0 0.0
        %878 = vmatprep.subr.mxu0 0.0
        %879 = vmatpush1.msra.mxu0 0.0
        %880 = vmatprep.subr.mxu0 0.0
        %881 = vmatpush1.msra.mxu0 0.0
        %882 = vmatprep.subr.mxu0 0.0
        %883 = vmatpush1.msra.mxu0 0.0
        %884 = vmatprep.subr.mxu0 0.0
        %885 = vmatpush1.msra.mxu0 0.0
        %886 = vmatprep.subr.mxu0 0.0
        %887 = vmatpush1.msra.mxu0 0.0
        %888 = vmatprep.subr.mxu0 0.0
        %889 = vmatpush1.msra.mxu0 0.0
        %890 = vmatprep.subr.mxu0 0.0
        %891 = vmatpush1.msra.mxu0 0.0
        %892 = vmatprep.subr.mxu0 0.0
        %893 = vmatpush1.msra.mxu0 0.0
        %894 = vmatprep.subr.mxu0 0.0
        %895 = vmatpush1.msra.mxu0 0.0
        %896 = vmatprep.subr.mxu0 0.0
        %897 = vmatpush1.msra.mxu0 0.0
        %898 = vmatprep.subr.mxu0 0.0
        %899 = vmatpush1.msra.mxu0 0.0
        %900 = vmatprep.subr.mxu0 0.0
        %901 = vmatpush1.msra.mxu0 0.0
        %902 = vmatprep.subr.mxu0 0.0
        %903 = vmatpush1.msra.mxu0 0.0
        %904 = vmatprep.subr.mxu0 0.0
        %905 = vmatpush1.msra.mxu0 0.0
        %906 = vmatprep.subr.mxu0 0.0
        %907 = vmatpush1.msra.mxu0 0.0
        %908 = vmatprep.subr.mxu0 0.0
        %909 = vmatpush1.msra.mxu0 0.0
        %910 = vmatprep.subr.mxu0 0.0
        %911 = vmatpush1.msra.mxu0 0.0
        %912 = vmatprep.subr.mxu0 0.0
        %913 = vmatpush1.msra.mxu0 0.0
        %914 = vmatprep.subr.mxu0 0.0
        %915 = vmatpush1.msra.mxu0 0.0
        %916 = vmatprep.subr.mxu0 0.0
        %917 = vmatpush1.msra.mxu0 0.0
        %918 = vmatprep.mubr.f32.mxu0 0.0
        %919 = vmatmul.mubr.f32.gmra.mrb[0].mxu0 %v852
        %v920 = vpop.f32.mrb[0].mxu0
        %v921 = vadd.f32 0.0, %v920
        %v922 = vpop.f32.mrb[0].mxu0
        %923 = vdwg.mxu0
        %v924 = vrcp.pop %v850
        %v925 = vmul.f32 %v921, %v924
        %926 = vst.msk [vmem:[#allocation2] sm:$0xff] %vm690, %v925
        %927 = vrot.lane.b32.xlu0 %v745, 120
        %v928 = vpop.permute.xlu0 %927
        %929 = vrot.lane.b32.xlu0 %v765, 120
        %v930 = vpop.permute.xlu0 %929
        %v931 = vsel %vm690, %v928, 0
        %v933 = vsel %vm690, %v930, 0
        %935 = vmatprep.subr.mxu0 0.0
        %936 = vmatpush1.xpose.msra.mxu0 %v933
        %937 = vmatprep.subr.mxu0 0.0
        %938 = vmatpush1.xpose.msra.mxu0 0.0
        %939 = vmatprep.subr.mxu0 0.0
        %940 = vmatpush1.xpose.msra.mxu0 0.0
        %941 = vmatprep.subr.mxu0 0.0
        %942 = vmatpush1.xpose.msra.mxu0 0.0
        %943 = vmatprep.subr.mxu0 0.0
        %944 = vmatpush1.xpose.msra.mxu0 0.0
        %945 = vmatprep.subr.mxu0 0.0
        %946 = vmatpush1.xpose.msra.mxu0 0.0
        %947 = vmatprep.subr.mxu0 0.0
        %948 = vmatpush1.xpose.msra.mxu0 0.0
        %949 = vmatprep.subr.mxu0 0.0
        %950 = vmatpush1.xpose.msra.mxu0 0.0
        %951 = vmatprep.subr.mxu0 0.0
        %952 = vmatpush1.xpose.msra.mxu0 0.0
        %953 = vmatprep.subr.mxu0 0.0
        %954 = vmatpush1.xpose.msra.mxu0 0.0
        %955 = vmatprep.subr.mxu0 0.0
        %956 = vmatpush1.xpose.msra.mxu0 0.0
        %957 = vmatprep.subr.mxu0 0.0
        %958 = vmatpush1.xpose.msra.mxu0 0.0
        %959 = vmatprep.subr.mxu0 0.0
        %960 = vmatpush1.xpose.msra.mxu0 0.0
        %961 = vmatprep.subr.mxu0 0.0
        %962 = vmatpush1.xpose.msra.mxu0 0.0
        %963 = vmatprep.subr.mxu0 0.0
        %964 = vmatpush1.xpose.msra.mxu0 0.0
        %965 = vmatprep.subr.mxu0 0.0
        %966 = vmatpush1.xpose.msra.mxu0 0.0
        %967 = vmatprep.subr.mxu0 0.0
        %968 = vmatpush1.xpose.msra.mxu0 0.0
        %969 = vmatprep.subr.mxu0 0.0
        %970 = vmatpush1.xpose.msra.mxu0 0.0
        %971 = vmatprep.subr.mxu0 0.0
        %972 = vmatpush1.xpose.msra.mxu0 0.0
        %973 = vmatprep.subr.mxu0 0.0
        %974 = vmatpush1.xpose.msra.mxu0 0.0
        %975 = vmatprep.subr.mxu0 0.0
        %976 = vmatpush1.xpose.msra.mxu0 0.0
        %977 = vmatprep.subr.mxu0 0.0
        %978 = vmatpush1.xpose.msra.mxu0 0.0
        %979 = vmatprep.subr.mxu0 0.0
        %980 = vmatpush1.xpose.msra.mxu0 0.0
        %981 = vmatprep.subr.mxu0 0.0
        %982 = vmatpush1.xpose.msra.mxu0 0.0
        %983 = vmatprep.subr.mxu0 0.0
        %984 = vmatpush1.xpose.msra.mxu0 0.0
        %985 = vmatprep.subr.mxu0 0.0
        %986 = vmatpush1.xpose.msra.mxu0 0.0
        %987 = vmatprep.subr.mxu0 0.0
        %988 = vmatpush1.xpose.msra.mxu0 0.0
        %989 = vmatprep.subr.mxu0 0.0
        %990 = vmatpush1.xpose.msra.mxu0 0.0
        %991 = vmatprep.subr.mxu0 0.0
        %992 = vmatpush1.xpose.msra.mxu0 0.0
        %993 = vmatprep.subr.mxu0 0.0
        %994 = vmatpush1.xpose.msra.mxu0 0.0
        %995 = vmatprep.subr.mxu0 0.0
        %996 = vmatpush1.xpose.msra.mxu0 0.0
        %997 = vmatprep.subr.mxu0 0.0
        %998 = vmatpush1.xpose.msra.mxu0 0.0
        %999 = vmatprep.mubr.f32.mxu0 0.0
        %1000 = vmatmul.mubr.f32.gmra.mrb[0].mxu0 %v931
        %v1001 = vpop.f32.mrb[0].mxu0
        %v1002 = vadd.f32 0.0, %v1001
        %v1003 = vpop.f32.mrb[0].mxu0
        %1004 = vdwg.mxu0
        %v1005 = vsel %vm690, %v1002, -inf
        %1006 = vmax.xlane.f32.xlu0 %v1005
        %v1007 = vpop.xlane.xlu0 %1006
        %v1008 = vsub.f32 %v1002, %v1007
        %v1009 = vmul.f32 %v1008, 1.442695
        %v1010 = vpow.pop %v1009
        %v1011 = vsel %vm690, %v1010, 0.0
        %1012 = vadd.xlane.f32.xlu0 %v1011
        %v1013 = vpop.xlane.xlu0 %1012
        %1015 = vrot.lane.b32.xlu0 %v676, 120
        %v1016 = vpop.permute.xlu0 %1015
        %v1019 = vsel %vm690, %v1010, 0
        %1021 = vmatprep.subr.mxu0 0.0
        %1022 = vmatpush1.msra.mxu0 %v1016
        %1023 = vmatprep.subr.mxu0 0.0
        %1024 = vmatpush1.msra.mxu0 0.0
        %1025 = vmatprep.subr.mxu0 0.0
        %1026 = vmatpush1.msra.mxu0 0.0
        %1027 = vmatprep.subr.mxu0 0.0
        %1028 = vmatpush1.msra.mxu0 0.0
        %1029 = vmatprep.subr.mxu0 0.0
        %1030 = vmatpush1.msra.mxu0 0.0
        %1031 = vmatprep.subr.mxu0 0.0
        %1032 = vmatpush1.msra.mxu0 0.0
        %1033 = vmatprep.subr.mxu0 0.0
        %1034 = vmatpush1.msra.mxu0 0.0
        %1035 = vmatprep.subr.mxu0 0.0
        %1036 = vmatpush1.msra.mxu0 0.0
        %1037 = vmatprep.subr.mxu0 0.0
        %1038 = vmatpush1.msra.mxu0 0.0
        %1039 = vmatprep.subr.mxu0 0.0
        %1040 = vmatpush1.msra.mxu0 0.0
        %1041 = vmatprep.subr.mxu0 0.0
        %1042 = vmatpush1.msra.mxu0 0.0
        %1043 = vmatprep.subr.mxu0 0.0
        %1044 = vmatpush1.msra.mxu0 0.0
        %1045 = vmatprep.subr.mxu0 0.0
        %1046 = vmatpush1.msra.mxu0 0.0
        %1047 = vmatprep.subr.mxu0 0.0
        %1048 = vmatpush1.msra.mxu0 0.0
        %1049 = vmatprep.subr.mxu0 0.0
        %1050 = vmatpush1.msra.mxu0 0.0
        %1051 = vmatprep.subr.mxu0 0.0
        %1052 = vmatpush1.msra.mxu0 0.0
        %1053 = vmatprep.subr.mxu0 0.0
        %1054 = vmatpush1.msra.mxu0 0.0
        %1055 = vmatprep.subr.mxu0 0.0
        %1056 = vmatpush1.msra.mxu0 0.0
        %1057 = vmatprep.subr.mxu0 0.0
        %1058 = vmatpush1.msra.mxu0 0.0
        %1059 = vmatprep.subr.mxu0 0.0
        %1060 = vmatpush1.msra.mxu0 0.0
        %1061 = vmatprep.subr.mxu0 0.0
        %1062 = vmatpush1.msra.mxu0 0.0
        %1063 = vmatprep.subr.mxu0 0.0
        %1064 = vmatpush1.msra.mxu0 0.0
        %1065 = vmatprep.subr.mxu0 0.0
        %1066 = vmatpush1.msra.mxu0 0.0
        %1067 = vmatprep.subr.mxu0 0.0
        %1068 = vmatpush1.msra.mxu0 0.0
        %1069 = vmatprep.subr.mxu0 0.0
        %1070 = vmatpush1.msra.mxu0 0.0
        %1071 = vmatprep.subr.mxu0 0.0
        %1072 = vmatpush1.msra.mxu0 0.0
        %1073 = vmatprep.subr.mxu0 0.0
        %1074 = vmatpush1.msra.mxu0 0.0
        %1075 = vmatprep.subr.mxu0 0.0
        %1076 = vmatpush1.msra.mxu0 0.0
        %1077 = vmatprep.subr.mxu0 0.0
        %1078 = vmatpush1.msra.mxu0 0.0
        %1079 = vmatprep.subr.mxu0 0.0
        %1080 = vmatpush1.msra.mxu0 0.0
        %1081 = vmatprep.subr.mxu0 0.0
        %1082 = vmatpush1.msra.mxu0 0.0
        %1083 = vmatprep.subr.mxu0 0.0
        %1084 = vmatpush1.msra.mxu0 0.0
        %1085 = vmatprep.mubr.f32.mxu0 0.0
        %1086 = vmatmul.mubr.f32.gmra.mrb[0].mxu0 %v1019
        %v1087 = vpop.f32.mrb[0].mxu0
        %v1088 = vadd.f32 0.0, %v1087
        %v1089 = vpop.f32.mrb[0].mxu0
        %1090 = vdwg.mxu0
        %v1091 = vrcp.pop %v1013
        %v1092 = vmul.f32 %v1088, %v1091
        %1094 = vrot.lane.b32.xlu0 %v1092, 8
        %v1095 = vpop.permute.xlu0 %1094
        %vm1097 = vcmask 130112
        %1098 = vst.msk [vmem:[#allocation2] sm:$0xff] %vm1097, %v1095
        %1099 = vrot.lane.b32.xlu0 %v745, 112
        %v1100 = vpop.permute.xlu0 %1099
        %1101 = vrot.lane.b32.xlu0 %v765, 112
        %v1102 = vpop.permute.xlu0 %1101
        %v1103 = vsel %vm690, %v1100, 0
        %v1105 = vsel %vm690, %v1102, 0
        %1107 = vmatprep.subr.mxu0 0.0
        %1108 = vmatpush1.xpose.msra.mxu0 %v1105
        %1109 = vmatprep.subr.mxu0 0.0
        %1110 = vmatpush1.xpose.msra.mxu0 0.0
        %1111 = vmatprep.subr.mxu0 0.0
        %1112 = vmatpush1.xpose.msra.mxu0 0.0
        %1113 = vmatprep.subr.mxu0 0.0
        %1114 = vmatpush1.xpose.msra.mxu0 0.0
        %1115 = vmatprep.subr.mxu0 0.0
        %1116 = vmatpush1.xpose.msra.mxu0 0.0
        %1117 = vmatprep.subr.mxu0 0.0
        %1118 = vmatpush1.xpose.msra.mxu0 0.0
        %1119 = vmatprep.subr.mxu0 0.0
        %1120 = vmatpush1.xpose.msra.mxu0 0.0
        %1121 = vmatprep.subr.mxu0 0.0
        %1122 = vmatpush1.xpose.msra.mxu0 0.0
        %1123 = vmatprep.subr.mxu0 0.0
        %1124 = vmatpush1.xpose.msra.mxu0 0.0
        %1125 = vmatprep.subr.mxu0 0.0
        %1126 = vmatpush1.xpose.msra.mxu0 0.0
        %1127 = vmatprep.subr.mxu0 0.0
        %1128 = vmatpush1.xpose.msra.mxu0 0.0
        %1129 = vmatprep.subr.mxu0 0.0
        %1130 = vmatpush1.xpose.msra.mxu0 0.0
        %1131 = vmatprep.subr.mxu0 0.0
        %1132 = vmatpush1.xpose.msra.mxu0 0.0
        %1133 = vmatprep.subr.mxu0 0.0
        %1134 = vmatpush1.xpose.msra.mxu0 0.0
        %1135 = vmatprep.subr.mxu0 0.0
        %1136 = vmatpush1.xpose.msra.mxu0 0.0
        %1137 = vmatprep.subr.mxu0 0.0
        %1138 = vmatpush1.xpose.msra.mxu0 0.0
        %1139 = vmatprep.subr.mxu0 0.0
        %1140 = vmatpush1.xpose.msra.mxu0 0.0
        %1141 = vmatprep.subr.mxu0 0.0
        %1142 = vmatpush1.xpose.msra.mxu0 0.0
        %1143 = vmatprep.subr.mxu0 0.0
        %1144 = vmatpush1.xpose.msra.mxu0 0.0
        %1145 = vmatprep.subr.mxu0 0.0
        %1146 = vmatpush1.xpose.msra.mxu0 0.0
        %1147 = vmatprep.subr.mxu0 0.0
        %1148 = vmatpush1.xpose.msra.mxu0 0.0
        %1149 = vmatprep.subr.mxu0 0.0
        %1150 = vmatpush1.xpose.msra.mxu0 0.0
        %1151 = vmatprep.subr.mxu0 0.0
        %1152 = vmatpush1.xpose.msra.mxu0 0.0
        %1153 = vmatprep.subr.mxu0 0.0
        %1154 = vmatpush1.xpose.msra.mxu0 0.0
        %1155 = vmatprep.subr.mxu0 0.0
        %1156 = vmatpush1.xpose.msra.mxu0 0.0
        %1157 = vmatprep.subr.mxu0 0.0
        %1158 = vmatpush1.xpose.msra.mxu0 0.0
        %1159 = vmatprep.subr.mxu0 0.0
        %1160 = vmatpush1.xpose.msra.mxu0 0.0
        %1161 = vmatprep.subr.mxu0 0.0
        %1162 = vmatpush1.xpose.msra.mxu0 0.0
        %1163 = vmatprep.subr.mxu0 0.0
        %1164 = vmatpush1.xpose.msra.mxu0 0.0
        %1165 = vmatprep.subr.mxu0 0.0
        %1166 = vmatpush1.xpose.msra.mxu0 0.0
        %1167 = vmatprep.subr.mxu0 0.0
        %1168 = vmatpush1.xpose.msra.mxu0 0.0
        %1169 = vmatprep.subr.mxu0 0.0
        %1170 = vmatpush1.xpose.msra.mxu0 0.0
        %1171 = vmatprep.mubr.f32.mxu0 0.0
        %1172 = vmatmul.mubr.f32.gmra.mrb[0].mxu0 %v1103
        %v1173 = vpop.f32.mrb[0].mxu0
        %v1174 = vadd.f32 0.0, %v1173
        %v1175 = vpop.f32.mrb[0].mxu0
        %1176 = vdwg.mxu0
        %v1177 = vsel %vm690, %v1174, -inf
        %1178 = vmax.xlane.f32.xlu0 %v1177
        %v1179 = vpop.xlane.xlu0 %1178
        %v1180 = vsub.f32 %v1174, %v1179
        %v1181 = vmul.f32 %v1180, 1.442695
        %v1182 = vpow.pop %v1181
        %v1183 = vsel %vm690, %v1182, 0.0
        %1184 = vadd.xlane.f32.xlu0 %v1183
        %v1185 = vpop.xlane.xlu0 %1184
        %1186 = vrot.lane.b32.xlu0 %v676, 112
        %v1187 = vpop.permute.xlu0 %1186
        %v1190 = vsel %vm690, %v1182, 0
        %1192 = vmatprep.subr.mxu0 0.0
        %1193 = vmatpush1.msra.mxu0 %v1187
        %1194 = vmatprep.subr.mxu0 0.0
        %1195 = vmatpush1.msra.mxu0 0.0
        %1196 = vmatprep.subr.mxu0 0.0
        %1197 = vmatpush1.msra.mxu0 0.0
        %1198 = vmatprep.subr.mxu0 0.0
        %1199 = vmatpush1.msra.mxu0 0.0
        %1200 = vmatprep.subr.mxu0 0.0
        %1201 = vmatpush1.msra.mxu0 0.0
        %1202 = vmatprep.subr.mxu0 0.0
        %1203 = vmatpush1.msra.mxu0 0.0
        %1204 = vmatprep.subr.mxu0 0.0
        %1205 = vmatpush1.msra.mxu0 0.0
        %1206 = vmatprep.subr.mxu0 0.0
        %1207 = vmatpush1.msra.mxu0 0.0
        %1208 = vmatprep.subr.mxu0 0.0
        %1209 = vmatpush1.msra.mxu0 0.0
        %1210 = vmatprep.subr.mxu0 0.0
        %1211 = vmatpush1.msra.mxu0 0.0
        %1212 = vmatprep.subr.mxu0 0.0
        %1213 = vmatpush1.msra.mxu0 0.0
        %1214 = vmatprep.subr.mxu0 0.0
        %1215 = vmatpush1.msra.mxu0 0.0
        %1216 = vmatprep.subr.mxu0 0.0
        %1217 = vmatpush1.msra.mxu0 0.0
        %1218 = vmatprep.subr.mxu0 0.0
        %1219 = vmatpush1.msra.mxu0 0.0
        %1220 = vmatprep.subr.mxu0 0.0
        %1221 = vmatpush1.msra.mxu0 0.0
        %1222 = vmatprep.subr.mxu0 0.0
        %1223 = vmatpush1.msra.mxu0 0.0
        %1224 = vmatprep.subr.mxu0 0.0
        %1225 = vmatpush1.msra.mxu0 0.0
        %1226 = vmatprep.subr.mxu0 0.0
        %1227 = vmatpush1.msra.mxu0 0.0
        %1228 = vmatprep.subr.mxu0 0.0
        %1229 = vmatpush1.msra.mxu0 0.0
        %1230 = vmatprep.subr.mxu0 0.0
        %1231 = vmatpush1.msra.mxu0 0.0
        %1232 = vmatprep.subr.mxu0 0.0
        %1233 = vmatpush1.msra.mxu0 0.0
        %1234 = vmatprep.subr.mxu0 0.0
        %1235 = vmatpush1.msra.mxu0 0.0
        %1236 = vmatprep.subr.mxu0 0.0
        %1237 = vmatpush1.msra.mxu0 0.0
        %1238 = vmatprep.subr.mxu0 0.0
        %1239 = vmatpush1.msra.mxu0 0.0
        %1240 = vmatprep.subr.mxu0 0.0
        %1241 = vmatpush1.msra.mxu0 0.0
        %1242 = vmatprep.subr.mxu0 0.0
        %1243 = vmatpush1.msra.mxu0 0.0
        %1244 = vmatprep.subr.mxu0 0.0
        %1245 = vmatpush1.msra.mxu0 0.0
        %1246 = vmatprep.subr.mxu0 0.0
        %1247 = vmatpush1.msra.mxu0 0.0
        %1248 = vmatprep.subr.mxu0 0.0
        %1249 = vmatpush1.msra.mxu0 0.0
        %1250 = vmatprep.subr.mxu0 0.0
        %1251 = vmatpush1.msra.mxu0 0.0
        %1252 = vmatprep.subr.mxu0 0.0
        %1253 = vmatpush1.msra.mxu0 0.0
        %1254 = vmatprep.subr.mxu0 0.0
        %1255 = vmatpush1.msra.mxu0 0.0
        %1256 = vmatprep.mubr.f32.mxu0 0.0
        %1257 = vmatmul.mubr.f32.gmra.mrb[0].mxu0 %v1190
        %v1258 = vpop.f32.mrb[0].mxu0
        %v1259 = vadd.f32 0.0, %v1258
        %v1260 = vpop.f32.mrb[0].mxu0
        %1261 = vdwg.mxu0
        %v1262 = vrcp.pop %v1185
        %v1263 = vmul.f32 %v1259, %v1262
        %1265 = vrot.lane.b32.xlu0 %v1263, 16
        %v1266 = vpop.permute.xlu0 %1265
        %vm1268 = vcmask 195712
        %1269 = vst.msk [vmem:[#allocation2] sm:$0xff] %vm1268, %v1266
        %1270 = vrot.lane.b32.xlu0 %v745, 104
        %v1271 = vpop.permute.xlu0 %1270
        %1272 = vrot.lane.b32.xlu0 %v765, 104
        %v1273 = vpop.permute.xlu0 %1272
        %v1274 = vsel %vm690, %v1271, 0
        %v1276 = vsel %vm690, %v1273, 0
        %1278 = vmatprep.subr.mxu0 0.0
        %1279 = vmatpush1.xpose.msra.mxu0 %v1276
        %1280 = vmatprep.subr.mxu0 0.0
        %1281 = vmatpush1.xpose.msra.mxu0 0.0
        %1282 = vmatprep.subr.mxu0 0.0
        %1283 = vmatpush1.xpose.msra.mxu0 0.0
        %1284 = vmatprep.subr.mxu0 0.0
        %1285 = vmatpush1.xpose.msra.mxu0 0.0
        %1286 = vmatprep.subr.mxu0 0.0
        %1287 = vmatpush1.xpose.msra.mxu0 0.0
        %1288 = vmatprep.subr.mxu0 0.0
        %1289 = vmatpush1.xpose.msra.mxu0 0.0
        %1290 = vmatprep.subr.mxu0 0.0
        %1291 = vmatpush1.xpose.msra.mxu0 0.0
        %1292 = vmatprep.subr.mxu0 0.0
        %1293 = vmatpush1.xpose.msra.mxu0 0.0
        %1294 = vmatprep.subr.mxu0 0.0
        %1295 = vmatpush1.xpose.msra.mxu0 0.0
        %1296 = vmatprep.subr.mxu0 0.0
        %1297 = vmatpush1.xpose.msra.mxu0 0.0
        %1298 = vmatprep.subr.mxu0 0.0
        %1299 = vmatpush1.xpose.msra.mxu0 0.0
        %1300 = vmatprep.subr.mxu0 0.0
        %1301 = vmatpush1.xpose.msra.mxu0 0.0
        %1302 = vmatprep.subr.mxu0 0.0
        %1303 = vmatpush1.xpose.msra.mxu0 0.0
        %1304 = vmatprep.subr.mxu0 0.0
        %1305 = vmatpush1.xpose.msra.mxu0 0.0
        %1306 = vmatprep.subr.mxu0 0.0
        %1307 = vmatpush1.xpose.msra.mxu0 0.0
        %1308 = vmatprep.subr.mxu0 0.0
        %1309 = vmatpush1.xpose.msra.mxu0 0.0
        %1310 = vmatprep.subr.mxu0 0.0
        %1311 = vmatpush1.xpose.msra.mxu0 0.0
        %1312 = vmatprep.subr.mxu0 0.0
        %1313 = vmatpush1.xpose.msra.mxu0 0.0
        %1314 = vmatprep.subr.mxu0 0.0
        %1315 = vmatpush1.xpose.msra.mxu0 0.0
        %1316 = vmatprep.subr.mxu0 0.0
        %1317 = vmatpush1.xpose.msra.mxu0 0.0
        %1318 = vmatprep.subr.mxu0 0.0
        %1319 = vmatpush1.xpose.msra.mxu0 0.0
        %1320 = vmatprep.subr.mxu0 0.0
        %1321 = vmatpush1.xpose.msra.mxu0 0.0
        %1322 = vmatprep.subr.mxu0 0.0
        %1323 = vmatpush1.xpose.msra.mxu0 0.0
        %1324 = vmatprep.subr.mxu0 0.0
        %1325 = vmatpush1.xpose.msra.mxu0 0.0
        %1326 = vmatprep.subr.mxu0 0.0
        %1327 = vmatpush1.xpose.msra.mxu0 0.0
        %1328 = vmatprep.subr.mxu0 0.0
        %1329 = vmatpush1.xpose.msra.mxu0 0.0
        %1330 = vmatprep.subr.mxu0 0.0
        %1331 = vmatpush1.xpose.msra.mxu0 0.0
        %1332 = vmatprep.subr.mxu0 0.0
        %1333 = vmatpush1.xpose.msra.mxu0 0.0
        %1334 = vmatprep.subr.mxu0 0.0
        %1335 = vmatpush1.xpose.msra.mxu0 0.0
        %1336 = vmatprep.subr.mxu0 0.0
        %1337 = vmatpush1.xpose.msra.mxu0 0.0
        %1338 = vmatprep.subr.mxu0 0.0
        %1339 = vmatpush1.xpose.msra.mxu0 0.0
        %1340 = vmatprep.subr.mxu0 0.0
        %1341 = vmatpush1.xpose.msra.mxu0 0.0
        %1342 = vmatprep.mubr.f32.mxu0 0.0
        %1343 = vmatmul.mubr.f32.gmra.mrb[0].mxu0 %v1274
        %v1344 = vpop.f32.mrb[0].mxu0
        %v1345 = vadd.f32 0.0, %v1344
        %v1346 = vpop.f32.mrb[0].mxu0
        %1347 = vdwg.mxu0
        %v1348 = vsel %vm690, %v1345, -inf
        %1349 = vmax.xlane.f32.xlu0 %v1348
        %v1350 = vpop.xlane.xlu0 %1349
        %v1351 = vsub.f32 %v1345, %v1350
        %v1352 = vmul.f32 %v1351, 1.442695
        %v1353 = vpow.pop %v1352
        %v1354 = vsel %vm690, %v1353, 0.0
        %1355 = vadd.xlane.f32.xlu0 %v1354
        %v1356 = vpop.xlane.xlu0 %1355
        %1357 = vrot.lane.b32.xlu0 %v676, 104
        %v1358 = vpop.permute.xlu0 %1357
        %v1361 = vsel %vm690, %v1353, 0
        %1363 = vmatprep.subr.mxu0 0.0
        %1364 = vmatpush1.msra.mxu0 %v1358
        %1365 = vmatprep.subr.mxu0 0.0
        %1366 = vmatpush1.msra.mxu0 0.0
        %1367 = vmatprep.subr.mxu0 0.0
        %1368 = vmatpush1.msra.mxu0 0.0
        %1369 = vmatprep.subr.mxu0 0.0
        %1370 = vmatpush1.msra.mxu0 0.0
        %1371 = vmatprep.subr.mxu0 0.0
        %1372 = vmatpush1.msra.mxu0 0.0
        %1373 = vmatprep.subr.mxu0 0.0
        %1374 = vmatpush1.msra.mxu0 0.0
        %1375 = vmatprep.subr.mxu0 0.0
        %1376 = vmatpush1.msra.mxu0 0.0
        %1377 = vmatprep.subr.mxu0 0.0
        %1378 = vmatpush1.msra.mxu0 0.0
        %1379 = vmatprep.subr.mxu0 0.0
        %1380 = vmatpush1.msra.mxu0 0.0
        %1381 = vmatprep.subr.mxu0 0.0
        %1382 = vmatpush1.msra.mxu0 0.0
        %1383 = vmatprep.subr.mxu0 0.0
        %1384 = vmatpush1.msra.mxu0 0.0
        %1385 = vmatprep.subr.mxu0 0.0
        %1386 = vmatpush1.msra.mxu0 0.0
        %1387 = vmatprep.subr.mxu0 0.0
        %1388 = vmatpush1.msra.mxu0 0.0
        %1389 = vmatprep.subr.mxu0 0.0
        %1390 = vmatpush1.msra.mxu0 0.0
        %1391 = vmatprep.subr.mxu0 0.0
        %1392 = vmatpush1.msra.mxu0 0.0
        %1393 = vmatprep.subr.mxu0 0.0
        %1394 = vmatpush1.msra.mxu0 0.0
        %1395 = vmatprep.subr.mxu0 0.0
        %1396 = vmatpush1.msra.mxu0 0.0
        %1397 = vmatprep.subr.mxu0 0.0
        %1398 = vmatpush1.msra.mxu0 0.0
        %1399 = vmatprep.subr.mxu0 0.0
        %1400 = vmatpush1.msra.mxu0 0.0
        %1401 = vmatprep.subr.mxu0 0.0
        %1402 = vmatpush1.msra.mxu0 0.0
        %1403 = vmatprep.subr.mxu0 0.0
        %1404 = vmatpush1.msra.mxu0 0.0
        %1405 = vmatprep.subr.mxu0 0.0
        %1406 = vmatpush1.msra.mxu0 0.0
        %1407 = vmatprep.subr.mxu0 0.0
        %1408 = vmatpush1.msra.mxu0 0.0
        %1409 = vmatprep.subr.mxu0 0.0
        %1410 = vmatpush1.msra.mxu0 0.0
        %1411 = vmatprep.subr.mxu0 0.0
        %1412 = vmatpush1.msra.mxu0 0.0
        %1413 = vmatprep.subr.mxu0 0.0
        %1414 = vmatpush1.msra.mxu0 0.0
        %1415 = vmatprep.subr.mxu0 0.0
        %1416 = vmatpush1.msra.mxu0 0.0
        %1417 = vmatprep.subr.mxu0 0.0
        %1418 = vmatpush1.msra.mxu0 0.0
        %1419 = vmatprep.subr.mxu0 0.0
        %1420 = vmatpush1.msra.mxu0 0.0
        %1421 = vmatprep.subr.mxu0 0.0
        %1422 = vmatpush1.msra.mxu0 0.0
        %1423 = vmatprep.subr.mxu0 0.0
        %1424 = vmatpush1.msra.mxu0 0.0
        %1425 = vmatprep.subr.mxu0 0.0
        %1426 = vmatpush1.msra.mxu0 0.0
        %1427 = vmatprep.mubr.f32.mxu0 0.0
        %1428 = vmatmul.mubr.f32.gmra.mrb[0].mxu0 %v1361
        %v1429 = vpop.f32.mrb[0].mxu0
        %v1430 = vadd.f32 0.0, %v1429
        %v1431 = vpop.f32.mrb[0].mxu0
        %1432 = vdwg.mxu0
        %v1433 = vrcp.pop %v1356
        %v1434 = vmul.f32 %v1430, %v1433
        %1436 = vrot.lane.b32.xlu0 %v1434, 24
        %v1437 = vpop.permute.xlu0 %1436
        %vm1439 = vcmask 261312
        %1440 = vst.msk [vmem:[#allocation2] sm:$0xff] %vm1439, %v1437
        %v1441 = vld [vmem:[#allocation2] sm:$0xff]
        %1442 = vst.msk [vmem:[%s430] sm:$0xff] %vm443, %v1441
        %s1443 = sand.u32 %s252, 1
        %s1444 = scalar_lea.sflag [#allocation5], %s1443
        %s1445 = sand.u32 %s252, 1
        %s1446 = smul.addr %s1445, 8
        %s1447 = scalar_lea.vmem [#allocation12], %s1446
        // Predicated region
        $region81: #{tpu_custom_call.1} parent=59 // pred_check
          %p1448 = pneg %p262
        $region82: #{tpu_custom_call.1} parent=59 // pred_check_branch
          %1450 = sbr.rel (%p1448) target = $region84
        $region83: #{tpu_custom_call.1} parent=59 // pred_region
          %s1452 = ssub.s32 128, 128
          %1453 = vsyncadd %s1444, %s1452
          %s1454 = smul.addr %s29, 128
          %s1455 = scalar_lea.hbm %s10, %s1454
          %s1457 = sshll.u32 %s1447, 4
          %s1458 = int_to_ptr.vmem [resolvable:$true] %s1457
          %1460 = dma.vmem_to_hbm [thread:$0]  %s1458, 128, %s1455, %s1444
        $region84: #{tpu_custom_call.1} parent=59 // pred_fallthru
          _
      $region60: #{tpu_custom_call.1} parent=5 // pred_fallthru
        _
      %p1461 = scmp.le.s32.totalorder 2, %s24
      // Predicated region
      $region85: #{tpu_custom_call.1} parent=5 // pred_check
        %p1462 = pneg %p1461
      $region86: #{tpu_custom_call.1} parent=5 // pred_check_branch
        %1464 = sbr.rel (%p1462) target = $region88
      $region87: #{tpu_custom_call.1} parent=5 // pred_region
        %s1465 = ssub.s32 %s24, 2
        // Predicated region
        $region89: #{tpu_custom_call.1} parent=87 // pred_check
          %p1466 = pneg %p268
        $region90: #{tpu_custom_call.1} parent=87 // pred_check_branch
          %1468 = sbr.rel (%p1466) target = $region92
        $region91: #{tpu_custom_call.1} parent=87 // pred_region
          %s1469 = sand.u32 %s253, 1
          %s1470 = scalar_lea.sflag [#allocation5], %s1469
          %s1471 = sand.u32 %s253, 1
          %s1472 = smul.addr %s1471, 8
          %s1473 = scalar_lea.vmem [#allocation12], %s1472
          %1474 = dma.done %s1470, 128
        $region92: #{tpu_custom_call.1} parent=87 // pred_fallthru
          _
      $region88: #{tpu_custom_call.1} parent=5 // pred_fallthru
        _
    $region6: #{tpu_custom_call.1} parent=1 // loop_footer
      %s28 = sadd.s32 1, %s24
    $region7: #{tpu_custom_call.1} parent=1 // loop_footer_branch
      %23 = sbr.rel target = $region3
    $region8: #{tpu_custom_call.1} parent=1 // loop_exit
      _
    %1475 = vsyncpa [#allocation4], 1
    %s1476 = scalar_lea.sflag [#allocation4], 1
    %1477 = vsyncpa %s1476, 1
    %1478 = vsyncpa [#allocation7], 1
    %1479 = vsyncpa [#allocation10], 1
    %1480 = vsyncpa [#allocation5], 1
    %s1481 = scalar_lea.sflag [#allocation5], 1
    %1482 = vsyncpa %s1481, 1

</llo_original>
